<compile_context>
chip_gen: v7x
topology: tpu7x:2x2x1
jax: 0.10.0
libtpu: 0.0.40
codegen_flags: <defaults>
</compile_context>

<pallas_src>
import functools

import jax
import jax.numpy as jnp
from jax.experimental import pallas as pl
from jax.experimental.pallas import tpu as pltpu


def _round_up(x, m):
    return ((x + m - 1) // m) * m


def _lstm_layer_kernel(x_ref, wih_ref, whh_ref, bias_ref, out_ref, cn_ref,
                       h_sc, c_sc, gx_sc, *,
                       hidden_pad, t_chunk, seq_len, has_tail, mxu_dtype):
    """One LSTM layer: fused input projection + recurrence.

    Grid = (n_batch_tiles, n_time_chunks); time is the last (serial) axis.

    x_ref   : (tc, TB, Din)      input chunk for this (batch tile, time chunk)
    wih_ref : (Din, 4Hp)         input->gates weight (transposed, gate-padded)
    whh_ref : (Hp, 4Hp)          hidden->gates weight (transposed, gate-padded)
    bias_ref: (1, 4Hp)           combined bias b_ih + b_hh (gate-padded), f32
    out_ref : (tc, TB, Hp)       hidden states for this chunk (mxu_dtype)
    cn_ref  : (TB, Hp)           final cell state (written at last chunk), f32
    h_sc    : (TB, Hp) mxu_dtype h carry across chunks
    c_sc    : (TB, Hp) f32       c carry across chunks
    gx_sc   : (tc, TB, 4Hp) f32  per-chunk input-projection scratch
    """
    chunk = pl.program_id(1)
    n_chunks = pl.num_programs(1)
    Hp = hidden_pad
    tc = t_chunk

    @pl.when(chunk == 0)
    def _():
        h_sc[...] = jnp.zeros_like(h_sc)
        c_sc[...] = jnp.zeros_like(c_sc)

    # ---- Chunk-level input projection (off the serial per-step path):
    #      one (tc*TB, Din) @ (Din, 4Hp) matmul, accumulated in f32, with the
    #      combined bias folded in, written to VMEM scratch.
    TB = x_ref.shape[1]
    Din = x_ref.shape[2]
    x2 = x_ref[...].reshape(tc * TB, Din).astype(mxu_dtype)
    gx = jnp.dot(x2, wih_ref[...], preferred_element_type=jnp.float32)
    gx_sc[...] = (gx + bias_ref[...]).reshape(tc, TB, 4 * Hp)

    whh = whh_ref[...]                       # resident (Hp, 4Hp)

    def make_step(masked):
        t0 = chunk * tc

        def step(t, carry):
            h_prev, c_prev = carry
            # Only the hidden->gates matmul sits on the serial critical path.
            gates = gx_sc[t] + jnp.dot(h_prev, whh,
                                       preferred_element_type=jnp.float32)
            # Gates packed [i, f, o, g]: one contiguous sigmoid slab + tanh.
            sig = jax.nn.sigmoid(gates[:, :3 * Hp])
            i_g = sig[:, 0 * Hp:1 * Hp]
            f_g = sig[:, 1 * Hp:2 * Hp]
            o_g = sig[:, 2 * Hp:3 * Hp]
            g_g = jnp.tanh(gates[:, 3 * Hp:4 * Hp])
            c_new = f_g * c_prev + i_g * g_g
            h_new = (o_g * jnp.tanh(c_new)).astype(h_sc.dtype)
            if masked:
                # Padded tail time steps must not advance the carried (h, c).
                valid = (t0 + t) < seq_len
                h_new = jnp.where(valid, h_new, h_prev)
                c_new = jnp.where(valid, c_new, c_prev)
            out_ref[t] = h_new.astype(out_ref.dtype)
            return h_new, c_new

        return step

    def run(masked):
        h_last, c_last = jax.lax.fori_loop(
            0, tc, make_step(masked), (h_sc[...], c_sc[...]), unroll=True)
        h_sc[...] = h_last
        c_sc[...] = c_last

        @pl.when(chunk == n_chunks - 1)
        def _():
            cn_ref[...] = c_last.astype(cn_ref.dtype)

    if not has_tail:                 # Python static: no masking ever needed.
        run(masked=False)
    else:
        @pl.when(chunk < n_chunks - 1)
        def _():
            run(masked=False)

        @pl.when(chunk == n_chunks - 1)
        def _():
            run(masked=True)


class LSTMEncoderPallas:
    """JAX/Pallas equivalent of the PyTorch `lstm_encoder` module."""

    def __init__(self, input_size, hidden_size, num_layers=1, key=None,
                 mxu_dtype=jnp.float32, t_chunk=32, batch_tile=None):
        self.input_size = int(input_size)
        self.hidden_size = int(hidden_size)
        self.num_layers = int(num_layers)
        self.mxu_dtype = mxu_dtype
        self.t_chunk = int(t_chunk)          # sweep per generation/shape
        self.batch_tile = batch_tile         # set to Bp//2 on v7x (2 TCs/chip)
        self.hidden_pad = _round_up(self.hidden_size, 128)

        if key is None:
            key = jax.random.PRNGKey(0)
        k = 1.0 / jnp.sqrt(self.hidden_size)

        self.params = []    # raw PyTorch-layout weights (for reference check)
        self._packed = []   # transposed / gate-padded weights for the kernel
        H, Hp = self.hidden_size, self.hidden_pad
        for layer in range(self.num_layers):
            in_sz = self.input_size if layer == 0 else H
            in_pad = self.input_size if layer == 0 else Hp
            key, k1, k2, k3, k4 = jax.random.split(key, 5)
            w_ih = jax.random.uniform(k1, (4 * H, in_sz), jnp.float32, -k, k)
            w_hh = jax.random.uniform(k2, (4 * H, H), jnp.float32, -k, k)
            b_ih = jax.random.uniform(k3, (4 * H,), jnp.float32, -k, k)
            b_hh = jax.random.uniform(k4, (4 * H,), jnp.float32, -k, k)
            self.params.append((w_ih, w_hh, b_ih, b_hh))
            self._packed.append(
                self._pack_layer(w_ih, w_hh, b_ih, b_hh, in_pad))

    # -- weight packing (done once at construction) ------------------------
    def _pack_layer(self, w_ih, w_hh, b_ih, b_hh, in_pad):
        H, Hp = self.hidden_size, self.hidden_pad
        # PyTorch gate order is [i, f, g, o]; repack as [i, f, o, g] so the
        # three sigmoids apply to one contiguous slab in the kernel.
        perm = jnp.array([0, 1, 3, 2])

        def pad_gate_rows(w):            # (4H, D) -> (4Hp, D), per-gate blocks
            D = w.shape[1]
            w4 = w.reshape(4, H, D)[perm]
            return (jnp.zeros((4, Hp, D), jnp.float32)
                    .at[:, :H, :].set(w4).reshape(4 * Hp, D))

        def pad_cols(w, d_pad):          # (R, D) -> (R, d_pad)
            R, D = w.shape
            if d_pad == D:
                return w
            return jnp.zeros((R, d_pad), jnp.float32).at[:, :D].set(w)

        wih_t = jnp.transpose(
            pad_cols(pad_gate_rows(w_ih), in_pad)).astype(self.mxu_dtype)
        whh_t = jnp.transpose(
            pad_cols(pad_gate_rows(w_hh), Hp)).astype(self.mxu_dtype)
        b4 = (b_ih + b_hh).reshape(4, H)[perm]
        bias = (jnp.zeros((4, Hp), jnp.float32)
                .at[:, :H].set(b4).reshape(1, 4 * Hp))   # stays f32
        return wih_t, whh_t, bias

    # -- one LSTM layer -----------------------------------------------------
    def _run_layer(self, layer_in, packed, *, tc, n_chunks, has_tail,
                   seq_len, batch_tile):
        """layer_in: (S_pad, Bp, Din) in mxu_dtype (batch & time already padded)."""
        wih_t, whh_t, bias = packed
        S_pad, Bp, Din = layer_in.shape
        Hp = self.hidden_pad
        TB = batch_tile
        nb = Bp // TB

        kernel = functools.partial(
            _lstm_layer_kernel, hidden_pad=Hp, t_chunk=tc, seq_len=seq_len,
            has_tail=has_tail, mxu_dtype=self.mxu_dtype)

        out_shapes = (
            jax.ShapeDtypeStruct((S_pad, Bp, Hp), self.mxu_dtype),
            jax.ShapeDtypeStruct((Bp, Hp), jnp.float32),
        )

        # Rough VMEM working set; raise the scoped limit only when needed
        # (v5e default scoped limit is 16 MiB).
        isz = jnp.dtype(self.mxu_dtype).itemsize
        needed = (2 * tc * TB * Din * isz              # x blocks (dbl-buffered)
                  + 2 * tc * TB * Hp * isz             # out blocks
                  + 2 * (Din + Hp) * 4 * Hp * isz      # W_ih, W_hh
                  + 2 * 4 * Hp * 4                     # bias
                  + 2 * TB * Hp * 4                    # c_n block
                  + TB * Hp * (isz + 4)                # h, c scratch
                  + tc * TB * 4 * Hp * 4)              # gx scratch
        vmem_limit = None
        if needed > 12 * (1 << 20):
            vmem_limit = int(min(needed * 1.5 + (2 << 20), 96 * (1 << 20)))

        grid_spec = pltpu.PrefetchScalarGridSpec(
            num_scalar_prefetch=0,
            grid=(nb, n_chunks),
            in_specs=[
                pl.BlockSpec((tc, TB, Din), lambda b, c: (c, b, 0)),
                pl.BlockSpec((Din, 4 * Hp), lambda b, c: (0, 0)),
                pl.BlockSpec((Hp, 4 * Hp), lambda b, c: (0, 0)),
                pl.BlockSpec((1, 4 * Hp), lambda b, c: (0, 0)),
            ],
            out_specs=[
                pl.BlockSpec((tc, TB, Hp), lambda b, c: (c, b, 0)),
                pl.BlockSpec((TB, Hp), lambda b, c: (b, 0)),
            ],
            scratch_shapes=[
                pltpu.VMEM((TB, Hp), self.mxu_dtype),      # h carry
                pltpu.VMEM((TB, Hp), jnp.float32),         # c carry
                pltpu.VMEM((tc, TB, 4 * Hp), jnp.float32),  # gx chunk
            ],
        )
        out_p, c_n = pl.pallas_call(
            kernel,
            out_shape=out_shapes,
            grid_spec=grid_spec,
            compiler_params=pltpu.CompilerParams(
                # batch tiles are independent (megacore on v7x); time is serial
                dimension_semantics=("parallel", "arbitrary"),
                vmem_limit_bytes=vmem_limit),
        )(layer_in, wih_t, whh_t, bias)
        return out_p, c_n

    # -- forward ------------------------------------------------------------
    def __call__(self, x_input):
        S, B = x_input.shape[0], x_input.shape[1]
        x = jnp.asarray(x_input, jnp.float32).reshape(S, B, self.input_size)

        # Batch padded to sublane multiple; batch tile must divide it.
        Bp = max(8, _round_up(B, 8))
        TB = self.batch_tile
        if TB is None:
            TB = Bp
        else:
            TB = max(8, _round_up(int(TB), 8))
            if Bp % TB != 0:
                TB = Bp

        # Time chunking (Python statics).
        tc = min(self.t_chunk, S)
        n_chunks = pl.cdiv(S, tc)
        S_pad = n_chunks * tc
        has_tail = (S_pad != S)

        # Pad once, on the narrow input (never on the 4Hp-wide gates).
        x_p = jnp.zeros((S_pad, Bp, self.input_size), self.mxu_dtype)
        x_p = x_p.at[:S, :B, :].set(x.astype(self.mxu_dtype))

        H = self.hidden_size
        layer_in = x_p
        h_list, c_list = [], []
        for packed in self._packed:
            layer_out, c_n_p = self._run_layer(
                layer_in, packed, tc=tc, n_chunks=n_chunks,
                has_tail=has_tail, seq_len=S, batch_tile=TB)
            h_list.append(
                layer_out[S - 1, :B, :H].astype(jnp.float32)[None])
            c_list.append(c_n_p[:B, :H][None])
            layer_in = layer_out          # stays padded (time+batch+lanes)
        lstm_out = layer_in[:S, :B, :H].astype(jnp.float32)
        h_n = jnp.concatenate(h_list, axis=0)   # (num_layers, B, H)
        c_n = jnp.concatenate(c_list, axis=0)
        return lstm_out, (h_n, c_n)


def _reference_lstm(x, params, hidden_size):
    """Pure-JAX reference (lax.scan) with PyTorch LSTM semantics."""
    layer_in = x
    hs, cs = [], []
    for (w_ih, w_hh, b_ih, b_hh) in params:
        B = x.shape[1]
        h0 = jnp.zeros((B, hidden_size), jnp.float32)
        c0 = jnp.zeros((B, hidden_size), jnp.float32)

        def step(carry, x_t):
            h, c = carry
            g = x_t @ w_ih.T + b_ih + h @ w_hh.T + b_hh
            i, f, gg, o = jnp.split(g, 4, axis=-1)
            i, f, o = jax.nn.sigmoid(i), jax.nn.sigmoid(f), jax.nn.sigmoid(o)
            gg = jnp.tanh(gg)
            c = f * c + i * gg
            h = o * jnp.tanh(c)
            return (h, c), h

        (h_n, c_n), out = jax.lax.scan(step, (h0, c0), layer_in)
        hs.append(h_n[None])
        cs.append(c_n[None])
        layer_in = out
    return out, (jnp.concatenate(hs, 0), jnp.concatenate(cs, 0))


if __name__ == "__main__":
    seq_len, batch, input_size, hidden_size = 8, 2, 4, 32

    key = jax.random.PRNGKey(0)
    kx, kp1, kp2, kxb = jax.random.split(key, 4)
    x = jax.random.normal(kx, (seq_len, batch, input_size), jnp.float32)

    # --- 1 layer, f32 MXU path: tight check against pure-JAX reference -----
    enc = LSTMEncoderPallas(input_size, hidden_size, num_layers=1, key=kp1)
    lstm_out, (h_n, c_n) = enc(x)
    jax.block_until_ready((lstm_out, h_n, c_n))

    ref_out, (ref_h, ref_c) = _reference_lstm(x, enc.params, hidden_size)
    assert lstm_out.shape == (seq_len, batch, hidden_size)
    assert h_n.shape == (1, batch, hidden_size)
    assert c_n.shape == (1, batch, hidden_size)
    assert jnp.allclose(lstm_out, ref_out, atol=1e-4, rtol=1e-4)
    assert jnp.allclose(h_n, ref_h, atol=1e-4, rtol=1e-4)
    assert jnp.allclose(c_n, ref_c, atol=1e-4, rtol=1e-4)

    # --- tail-masked path: t_chunk=3 -> S_pad=9 > S=8 (same params as enc) --
    enc_t = LSTMEncoderPallas(input_size, hidden_size, num_layers=1, key=kp1,
                              t_chunk=3)
    out_t, (h_t, c_t) = enc_t(x)
    jax.block_until_ready((out_t, h_t, c_t))
    assert jnp.allclose(out_t, ref_out, atol=1e-4, rtol=1e-4)
    assert jnp.allclose(h_t, ref_h, atol=1e-4, rtol=1e-4)
    assert jnp.allclose(c_t, ref_c, atol=1e-4, rtol=1e-4)

    # --- 2 stacked layers ---------------------------------------------------
    enc2 = LSTMEncoderPallas(input_size, hidden_size, num_layers=2, key=kp2)
    out2, (h2, c2) = enc2(x)
    jax.block_until_ready((out2, h2, c2))
    ref2_out, (ref2_h, ref2_c) = _reference_lstm(x, enc2.params, hidden_size)
    assert out2.shape == (seq_len, batch, hidden_size)
    assert h2.shape == (2, batch, hidden_size)
    assert jnp.allclose(out2, ref2_out, atol=1e-4, rtol=1e-4)
    assert jnp.allclose(h2, ref2_h, atol=1e-4, rtol=1e-4)
    assert jnp.allclose(c2, ref2_c, atol=1e-4, rtol=1e-4)

    # --- batch-tiled grid (v7x megacore path): batch=16, TB=8 -> grid (2, .) -
    xb = jax.random.normal(kxb, (seq_len, 16, input_size), jnp.float32)
    enc_b = LSTMEncoderPallas(input_size, hidden_size, num_layers=1, key=kp1,
                              batch_tile=8)
    out_b, (h_b, c_b) = enc_b(xb)
    jax.block_until_ready((out_b, h_b, c_b))
    refb_out, (refb_h, refb_c) = _reference_lstm(xb, enc_b.params, hidden_size)
    assert jnp.allclose(out_b, refb_out, atol=1e-4, rtol=1e-4)
    assert jnp.allclose(h_b, refb_h, atol=1e-4, rtol=1e-4)
    assert jnp.allclose(c_b, refb_c, atol=1e-4, rtol=1e-4)

    # --- bf16 MXU inputs (recommended on v6e/v7x): loose tolerance ----------
    # NOTE: h carry / activations are bf16, so error grows slowly with seq_len;
    # keep the f32 default for very long sequences.
    enc_bf = LSTMEncoderPallas(input_size, hidden_size, num_layers=1, key=kp1,
                               mxu_dtype=jnp.bfloat16)
    out_bf, (h_bf, c_bf) = enc_bf(x)
    jax.block_until_ready((out_bf, h_bf, c_bf))
    assert jnp.allclose(out_bf, ref_out, atol=1e-1, rtol=1e-1)

    print("KERNEL_OK")
</pallas_src>

<mosaic_0001>
module attributes {stable_mosaic.version = 11 : i64} {
  func.func @_lstm_layer_kernel(%arg0: i32, %arg1: i32, %arg2: memref<8x8x4xf32, #tpu.memory_space<vmem>>, %arg3: memref<4x512xf32, #tpu.memory_space<vmem>>, %arg4: memref<128x512xf32, #tpu.memory_space<vmem>>, %arg5: memref<1x512xf32, #tpu.memory_space<vmem>>, %arg6: memref<8x8x128xf32, #tpu.memory_space<vmem>>, %arg7: memref<8x128xf32, #tpu.memory_space<vmem>>, %arg8: memref<8x128xf32, #tpu.memory_space<vmem>>, %arg9: memref<8x128xf32, #tpu.memory_space<vmem>>, %arg10: memref<8x8x512xf32, #tpu.memory_space<vmem>>) attributes {dimension_semantics = [#tpu.dimension_semantics<parallel>, #tpu.dimension_semantics<arbitrary>], iteration_bounds = array<i64: 1, 1>, scalar_prefetch = 0 : i64, scratch_operands = 3 : i64, tpu.core_type = #tpu.core_type<tc>, window_params = [{transform_indices = @transform_0, window_bounds = array<i64: 8, 8, 4>}, {pipeline_mode = #tpu.pipeline_mode<synchronous>, transform_indices = @transform_1, window_bounds = array<i64: 4, 512>}, {pipeline_mode = #tpu.pipeline_mode<synchronous>, transform_indices = @transform_2, window_bounds = array<i64: 128, 512>}, {pipeline_mode = #tpu.pipeline_mode<synchronous>, transform_indices = @transform_3, window_bounds = array<i64: 1, 512>}, {transform_indices = @transform_4, window_bounds = array<i64: 8, 8, 128>}, {transform_indices = @transform_5, window_bounds = array<i64: 8, 128>}]} {
    %c0_i32 = arith.constant 0 : i32
    %0 = arith.cmpi eq, %arg1, %c0_i32 : i32
    %1 = arith.extui %0 : i1 to i32
    %c0_i32_0 = arith.constant 0 : i32
    %2 = arith.cmpi ne, %1, %c0_i32_0 : i32
    scf.if %2 {
      %cst_71 = arith.constant 0.000000e+00 : f32
      %220 = vector.broadcast %cst_71 : f32 to vector<8x128xf32>
      %c0_72 = arith.constant 0 : index
      %c0_73 = arith.constant 0 : index
      %221 = vector.load %arg8[%c0_72, %c0_73] : memref<8x128xf32, #tpu.memory_space<vmem>>, vector<8x128xf32>
      tpu.vector_store %arg8[%c0_72, %c0_73], %220 {strides = array<i32>} : memref<8x128xf32, #tpu.memory_space<vmem>>, vector<8x128xf32>,
      %cst_74 = arith.constant 0.000000e+00 : f32
      %222 = vector.broadcast %cst_74 : f32 to vector<8x128xf32>
      %c0_75 = arith.constant 0 : index
      %c0_76 = arith.constant 0 : index
      %223 = vector.load %arg9[%c0_75, %c0_76] : memref<8x128xf32, #tpu.memory_space<vmem>>, vector<8x128xf32>
      tpu.vector_store %arg9[%c0_75, %c0_76], %222 {strides = array<i32>} : memref<8x128xf32, #tpu.memory_space<vmem>>, vector<8x128xf32>,
    } else {
    }
    %c0 = arith.constant 0 : index
    %c0_1 = arith.constant 0 : index
    %c0_2 = arith.constant 0 : index
    %3 = vector.load %arg2[%c0, %c0_1, %c0_2] : memref<8x8x4xf32, #tpu.memory_space<vmem>>, vector<8x8x4xf32>
    %4 = vector.shape_cast %3 : vector<8x8x4xf32> to vector<64x4xf32>
    %c0_3 = arith.constant 0 : index
    %c0_4 = arith.constant 0 : index
    %5 = vector.load %arg3[%c0_3, %c0_4] : memref<4x512xf32, #tpu.memory_space<vmem>>, vector<4x512xf32>
    %cst = arith.constant dense<0.000000e+00> : vector<64x512xf32>
    %6 = tpu.matmul %4, %5, %cst {dimension_numbers = #tpu.dot_dimension_numbers<[1], [0], [0], [1], [0, 0, 1, 1], [], []>} : vector<64x4xf32>, vector<4x512xf32>, vector<64x512xf32> -> vector<64x512xf32>
    %c0_5 = arith.constant 0 : index
    %c0_6 = arith.constant 0 : index
    %7 = vector.load %arg5[%c0_5, %c0_6] : memref<1x512xf32, #tpu.memory_space<vmem>>, vector<1x512xf32>
    %8 = vector.broadcast %7 : vector<1x512xf32> to vector<64x512xf32>
    %9 = arith.addf %6, %8 : vector<64x512xf32>
    %10 = vector.shape_cast %9 : vector<64x512xf32> to vector<8x8x512xf32>
    %c0_7 = arith.constant 0 : index
    %c0_8 = arith.constant 0 : index
    %c0_9 = arith.constant 0 : index
    %11 = vector.load %arg10[%c0_7, %c0_8, %c0_9] : memref<8x8x512xf32, #tpu.memory_space<vmem>>, vector<8x8x512xf32>
    tpu.vector_store %arg10[%c0_7, %c0_8, %c0_9], %10 {strides = array<i32>} : memref<8x8x512xf32, #tpu.memory_space<vmem>>, vector<8x8x512xf32>,
    %c0_10 = arith.constant 0 : index
    %c0_11 = arith.constant 0 : index
    %12 = vector.load %arg4[%c0_10, %c0_11] : memref<128x512xf32, #tpu.memory_space<vmem>>, vector<128x512xf32>
    %c0_12 = arith.constant 0 : index
    %c0_13 = arith.constant 0 : index
    %13 = vector.load %arg8[%c0_12, %c0_13] : memref<8x128xf32, #tpu.memory_space<vmem>>, vector<8x128xf32>
    %c0_14 = arith.constant 0 : index
    %c0_15 = arith.constant 0 : index
    %14 = vector.load %arg9[%c0_14, %c0_15] : memref<8x128xf32, #tpu.memory_space<vmem>>, vector<8x128xf32>
    %c0_i32_16 = arith.constant 0 : i32
    %15 = arith.index_cast %c0_i32_16 : i32 to index
    %c0_17 = arith.constant 0 : index
    %c0_18 = arith.constant 0 : index
    %16 = vector.load %arg10[%15, %c0_17, %c0_18] : memref<8x8x512xf32, #tpu.memory_space<vmem>>, vector<1x8x512xf32>
    %17 = vector.shape_cast %16 : vector<1x8x512xf32> to vector<8x512xf32>
    %cst_19 = arith.constant dense<0.000000e+00> : vector<8x512xf32>
    %18 = tpu.matmul %13, %12, %cst_19 {dimension_numbers = #tpu.dot_dimension_numbers<[1], [0], [0], [1], [0, 0, 1, 1], [], []>} : vector<8x128xf32>, vector<128x512xf32>, vector<8x512xf32> -> vector<8x512xf32>
    %19 = arith.addf %17, %18 : vector<8x512xf32>
    %20 = vector.extract_strided_slice %19 {offsets = [0, 0], sizes = [8, 384], strides = [1, 1]} : vector<8x512xf32> to vector<8x384xf32>
    %21 = arith.negf %20 : vector<8x384xf32>
    %22 = math.exp %21 : vector<8x384xf32>
    %cst_20 = arith.constant 1.000000e+00 : f32
    %23 = vector.broadcast %cst_20 : f32 to vector<8x384xf32>
    %24 = arith.addf %23, %22 : vector<8x384xf32>
    %25 = arith.divf %23, %24 : vector<8x384xf32>
    %26 = vector.extract_strided_slice %25 {offsets = [0, 0], sizes = [8, 128], strides = [1, 1]} : vector<8x384xf32> to vector<8x128xf32>
    %27 = vector.extract_strided_slice %25 {offsets = [0, 128], sizes = [8, 128], strides = [1, 1]} : vector<8x384xf32> to vector<8x128xf32>
    %28 = vector.extract_strided_slice %25 {offsets = [0, 256], sizes = [8, 128], strides = [1, 1]} : vector<8x384xf32> to vector<8x128xf32>
    %29 = vector.extract_strided_slice %19 {offsets = [0, 384], sizes = [8, 128], strides = [1, 1]} : vector<8x512xf32> to vector<8x128xf32>
    %30 = math.tanh %29 : vector<8x128xf32>
    %31 = arith.mulf %27, %14 : vector<8x128xf32>
    %32 = arith.mulf %26, %30 : vector<8x128xf32>
    %33 = arith.addf %31, %32 : vector<8x128xf32>
    %34 = math.tanh %33 : vector<8x128xf32>
    %35 = arith.mulf %28, %34 : vector<8x128xf32>
    %36 = arith.index_cast %c0_i32_16 : i32 to index
    %c0_21 = arith.constant 0 : index
    %c0_22 = arith.constant 0 : index
    %37 = vector.load %arg6[%36, %c0_21, %c0_22] : memref<8x8x128xf32, #tpu.memory_space<vmem>>, vector<1x8x128xf32>
    %38 = vector.shape_cast %37 : vector<1x8x128xf32> to vector<8x128xf32>
    %39 = vector.shape_cast %35 : vector<8x128xf32> to vector<1x8x128xf32>
    tpu.vector_store %arg6[%36, %c0_21, %c0_22], %39 {strides = array<i32>} : memref<8x8x128xf32, #tpu.memory_space<vmem>>, vector<1x8x128xf32>,
    %c1_i32 = arith.constant 1 : i32
    %40 = arith.index_cast %c1_i32 : i32 to index
    %c0_23 = arith.constant 0 : index
    %c0_24 = arith.constant 0 : index
    %41 = vector.load %arg10[%40, %c0_23, %c0_24] : memref<8x8x512xf32, #tpu.memory_space<vmem>>, vector<1x8x512xf32>
    %42 = vector.shape_cast %41 : vector<1x8x512xf32> to vector<8x512xf32>
    %cst_25 = arith.constant dense<0.000000e+00> : vector<8x512xf32>
    %43 = tpu.matmul %35, %12, %cst_25 {dimension_numbers = #tpu.dot_dimension_numbers<[1], [0], [0], [1], [0, 0, 1, 1], [], []>} : vector<8x128xf32>, vector<128x512xf32>, vector<8x512xf32> -> vector<8x512xf32>
    %44 = arith.addf %42, %43 : vector<8x512xf32>
    %45 = vector.extract_strided_slice %44 {offsets = [0, 0], sizes = [8, 384], strides = [1, 1]} : vector<8x512xf32> to vector<8x384xf32>
    %46 = arith.negf %45 : vector<8x384xf32>
    %47 = math.exp %46 : vector<8x384xf32>
    %cst_26 = arith.constant 1.000000e+00 : f32
    %48 = vector.broadcast %cst_26 : f32 to vector<8x384xf32>
    %49 = arith.addf %48, %47 : vector<8x384xf32>
    %50 = arith.divf %48, %49 : vector<8x384xf32>
    %51 = vector.extract_strided_slice %50 {offsets = [0, 0], sizes = [8, 128], strides = [1, 1]} : vector<8x384xf32> to vector<8x128xf32>
    %52 = vector.extract_strided_slice %50 {offsets = [0, 128], sizes = [8, 128], strides = [1, 1]} : vector<8x384xf32> to vector<8x128xf32>
    %53 = vector.extract_strided_slice %50 {offsets = [0, 256], sizes = [8, 128], strides = [1, 1]} : vector<8x384xf32> to vector<8x128xf32>
    %54 = vector.extract_strided_slice %44 {offsets = [0, 384], sizes = [8, 128], strides = [1, 1]} : vector<8x512xf32> to vector<8x128xf32>
    %55 = math.tanh %54 : vector<8x128xf32>
    %56 = arith.mulf %52, %33 : vector<8x128xf32>
    %57 = arith.mulf %51, %55 : vector<8x128xf32>
    %58 = arith.addf %56, %57 : vector<8x128xf32>
    %59 = math.tanh %58 : vector<8x128xf32>
    %60 = arith.mulf %53, %59 : vector<8x128xf32>
    %61 = arith.index_cast %c1_i32 : i32 to index
    %c0_27 = arith.constant 0 : index
    %c0_28 = arith.constant 0 : index
    %62 = vector.load %arg6[%61, %c0_27, %c0_28] : memref<8x8x128xf32, #tpu.memory_space<vmem>>, vector<1x8x128xf32>
    %63 = vector.shape_cast %62 : vector<1x8x128xf32> to vector<8x128xf32>
    %64 = vector.shape_cast %60 : vector<8x128xf32> to vector<1x8x128xf32>
    tpu.vector_store %arg6[%61, %c0_27, %c0_28], %64 {strides = array<i32>} : memref<8x8x128xf32, #tpu.memory_space<vmem>>, vector<1x8x128xf32>,
    %c2_i32 = arith.constant 2 : i32
    %65 = arith.index_cast %c2_i32 : i32 to index
    %c0_29 = arith.constant 0 : index
    %c0_30 = arith.constant 0 : index
    %66 = vector.load %arg10[%65, %c0_29, %c0_30] : memref<8x8x512xf32, #tpu.memory_space<vmem>>, vector<1x8x512xf32>
    %67 = vector.shape_cast %66 : vector<1x8x512xf32> to vector<8x512xf32>
    %cst_31 = arith.constant dense<0.000000e+00> : vector<8x512xf32>
    %68 = tpu.matmul %60, %12, %cst_31 {dimension_numbers = #tpu.dot_dimension_numbers<[1], [0], [0], [1], [0, 0, 1, 1], [], []>} : vector<8x128xf32>, vector<128x512xf32>, vector<8x512xf32> -> vector<8x512xf32>
    %69 = arith.addf %67, %68 : vector<8x512xf32>
    %70 = vector.extract_strided_slice %69 {offsets = [0, 0], sizes = [8, 384], strides = [1, 1]} : vector<8x512xf32> to vector<8x384xf32>
    %71 = arith.negf %70 : vector<8x384xf32>
    %72 = math.exp %71 : vector<8x384xf32>
    %cst_32 = arith.constant 1.000000e+00 : f32
    %73 = vector.broadcast %cst_32 : f32 to vector<8x384xf32>
    %74 = arith.addf %73, %72 : vector<8x384xf32>
    %75 = arith.divf %73, %74 : vector<8x384xf32>
    %76 = vector.extract_strided_slice %75 {offsets = [0, 0], sizes = [8, 128], strides = [1, 1]} : vector<8x384xf32> to vector<8x128xf32>
    %77 = vector.extract_strided_slice %75 {offsets = [0, 128], sizes = [8, 128], strides = [1, 1]} : vector<8x384xf32> to vector<8x128xf32>
    %78 = vector.extract_strided_slice %75 {offsets = [0, 256], sizes = [8, 128], strides = [1, 1]} : vector<8x384xf32> to vector<8x128xf32>
    %79 = vector.extract_strided_slice %69 {offsets = [0, 384], sizes = [8, 128], strides = [1, 1]} : vector<8x512xf32> to vector<8x128xf32>
    %80 = math.tanh %79 : vector<8x128xf32>
    %81 = arith.mulf %77, %58 : vector<8x128xf32>
    %82 = arith.mulf %76, %80 : vector<8x128xf32>
    %83 = arith.addf %81, %82 : vector<8x128xf32>
    %84 = math.tanh %83 : vector<8x128xf32>
    %85 = arith.mulf %78, %84 : vector<8x128xf32>
    %86 = arith.index_cast %c2_i32 : i32 to index
    %c0_33 = arith.constant 0 : index
    %c0_34 = arith.constant 0 : index
    %87 = vector.load %arg6[%86, %c0_33, %c0_34] : memref<8x8x128xf32, #tpu.memory_space<vmem>>, vector<1x8x128xf32>
    %88 = vector.shape_cast %87 : vector<1x8x128xf32> to vector<8x128xf32>
    %89 = vector.shape_cast %85 : vector<8x128xf32> to vector<1x8x128xf32>
    tpu.vector_store %arg6[%86, %c0_33, %c0_34], %89 {strides = array<i32>} : memref<8x8x128xf32, #tpu.memory_space<vmem>>, vector<1x8x128xf32>,
    %c3_i32 = arith.constant 3 : i32
    %90 = arith.index_cast %c3_i32 : i32 to index
    %c0_35 = arith.constant 0 : index
    %c0_36 = arith.constant 0 : index
    %91 = vector.load %arg10[%90, %c0_35, %c0_36] : memref<8x8x512xf32, #tpu.memory_space<vmem>>, vector<1x8x512xf32>
    %92 = vector.shape_cast %91 : vector<1x8x512xf32> to vector<8x512xf32>
    %cst_37 = arith.constant dense<0.000000e+00> : vector<8x512xf32>
    %93 = tpu.matmul %85, %12, %cst_37 {dimension_numbers = #tpu.dot_dimension_numbers<[1], [0], [0], [1], [0, 0, 1, 1], [], []>} : vector<8x128xf32>, vector<128x512xf32>, vector<8x512xf32> -> vector<8x512xf32>
    %94 = arith.addf %92, %93 : vector<8x512xf32>
    %95 = vector.extract_strided_slice %94 {offsets = [0, 0], sizes = [8, 384], strides = [1, 1]} : vector<8x512xf32> to vector<8x384xf32>
    %96 = arith.negf %95 : vector<8x384xf32>
    %97 = math.exp %96 : vector<8x384xf32>
    %cst_38 = arith.constant 1.000000e+00 : f32
    %98 = vector.broadcast %cst_38 : f32 to vector<8x384xf32>
    %99 = arith.addf %98, %97 : vector<8x384xf32>
    %100 = arith.divf %98, %99 : vector<8x384xf32>
    %101 = vector.extract_strided_slice %100 {offsets = [0, 0], sizes = [8, 128], strides = [1, 1]} : vector<8x384xf32> to vector<8x128xf32>
    %102 = vector.extract_strided_slice %100 {offsets = [0, 128], sizes = [8, 128], strides = [1, 1]} : vector<8x384xf32> to vector<8x128xf32>
    %103 = vector.extract_strided_slice %100 {offsets = [0, 256], sizes = [8, 128], strides = [1, 1]} : vector<8x384xf32> to vector<8x128xf32>
    %104 = vector.extract_strided_slice %94 {offsets = [0, 384], sizes = [8, 128], strides = [1, 1]} : vector<8x512xf32> to vector<8x128xf32>
    %105 = math.tanh %104 : vector<8x128xf32>
    %106 = arith.mulf %102, %83 : vector<8x128xf32>
    %107 = arith.mulf %101, %105 : vector<8x128xf32>
    %108 = arith.addf %106, %107 : vector<8x128xf32>
    %109 = math.tanh %108 : vector<8x128xf32>
    %110 = arith.mulf %103, %109 : vector<8x128xf32>
    %111 = arith.index_cast %c3_i32 : i32 to index
    %c0_39 = arith.constant 0 : index
    %c0_40 = arith.constant 0 : index
    %112 = vector.load %arg6[%111, %c0_39, %c0_40] : memref<8x8x128xf32, #tpu.memory_space<vmem>>, vector<1x8x128xf32>
    %113 = vector.shape_cast %112 : vector<1x8x128xf32> to vector<8x128xf32>
    %114 = vector.shape_cast %110 : vector<8x128xf32> to vector<1x8x128xf32>
    tpu.vector_store %arg6[%111, %c0_39, %c0_40], %114 {strides = array<i32>} : memref<8x8x128xf32, #tpu.memory_space<vmem>>, vector<1x8x128xf32>,
    %c4_i32 = arith.constant 4 : i32
    %115 = arith.index_cast %c4_i32 : i32 to index
    %c0_41 = arith.constant 0 : index
    %c0_42 = arith.constant 0 : index
    %116 = vector.load %arg10[%115, %c0_41, %c0_42] : memref<8x8x512xf32, #tpu.memory_space<vmem>>, vector<1x8x512xf32>
    %117 = vector.shape_cast %116 : vector<1x8x512xf32> to vector<8x512xf32>
    %cst_43 = arith.constant dense<0.000000e+00> : vector<8x512xf32>
    %118 = tpu.matmul %110, %12, %cst_43 {dimension_numbers = #tpu.dot_dimension_numbers<[1], [0], [0], [1], [0, 0, 1, 1], [], []>} : vector<8x128xf32>, vector<128x512xf32>, vector<8x512xf32> -> vector<8x512xf32>
    %119 = arith.addf %117, %118 : vector<8x512xf32>
    %120 = vector.extract_strided_slice %119 {offsets = [0, 0], sizes = [8, 384], strides = [1, 1]} : vector<8x512xf32> to vector<8x384xf32>
    %121 = arith.negf %120 : vector<8x384xf32>
    %122 = math.exp %121 : vector<8x384xf32>
    %cst_44 = arith.constant 1.000000e+00 : f32
    %123 = vector.broadcast %cst_44 : f32 to vector<8x384xf32>
    %124 = arith.addf %123, %122 : vector<8x384xf32>
    %125 = arith.divf %123, %124 : vector<8x384xf32>
    %126 = vector.extract_strided_slice %125 {offsets = [0, 0], sizes = [8, 128], strides = [1, 1]} : vector<8x384xf32> to vector<8x128xf32>
    %127 = vector.extract_strided_slice %125 {offsets = [0, 128], sizes = [8, 128], strides = [1, 1]} : vector<8x384xf32> to vector<8x128xf32>
    %128 = vector.extract_strided_slice %125 {offsets = [0, 256], sizes = [8, 128], strides = [1, 1]} : vector<8x384xf32> to vector<8x128xf32>
    %129 = vector.extract_strided_slice %119 {offsets = [0, 384], sizes = [8, 128], strides = [1, 1]} : vector<8x512xf32> to vector<8x128xf32>
    %130 = math.tanh %129 : vector<8x128xf32>
    %131 = arith.mulf %127, %108 : vector<8x128xf32>
    %132 = arith.mulf %126, %130 : vector<8x128xf32>
    %133 = arith.addf %131, %132 : vector<8x128xf32>
    %134 = math.tanh %133 : vector<8x128xf32>
    %135 = arith.mulf %128, %134 : vector<8x128xf32>
    %136 = arith.index_cast %c4_i32 : i32 to index
    %c0_45 = arith.constant 0 : index
    %c0_46 = arith.constant 0 : index
    %137 = vector.load %arg6[%136, %c0_45, %c0_46] : memref<8x8x128xf32, #tpu.memory_space<vmem>>, vector<1x8x128xf32>
    %138 = vector.shape_cast %137 : vector<1x8x128xf32> to vector<8x128xf32>
    %139 = vector.shape_cast %135 : vector<8x128xf32> to vector<1x8x128xf32>
    tpu.vector_store %arg6[%136, %c0_45, %c0_46], %139 {strides = array<i32>} : memref<8x8x128xf32, #tpu.memory_space<vmem>>, vector<1x8x128xf32>,
    %c5_i32 = arith.constant 5 : i32
    %140 = arith.index_cast %c5_i32 : i32 to index
    %c0_47 = arith.constant 0 : index
    %c0_48 = arith.constant 0 : index
    %141 = vector.load %arg10[%140, %c0_47, %c0_48] : memref<8x8x512xf32, #tpu.memory_space<vmem>>, vector<1x8x512xf32>
    %142 = vector.shape_cast %141 : vector<1x8x512xf32> to vector<8x512xf32>
    %cst_49 = arith.constant dense<0.000000e+00> : vector<8x512xf32>
    %143 = tpu.matmul %135, %12, %cst_49 {dimension_numbers = #tpu.dot_dimension_numbers<[1], [0], [0], [1], [0, 0, 1, 1], [], []>} : vector<8x128xf32>, vector<128x512xf32>, vector<8x512xf32> -> vector<8x512xf32>
    %144 = arith.addf %142, %143 : vector<8x512xf32>
    %145 = vector.extract_strided_slice %144 {offsets = [0, 0], sizes = [8, 384], strides = [1, 1]} : vector<8x512xf32> to vector<8x384xf32>
    %146 = arith.negf %145 : vector<8x384xf32>
    %147 = math.exp %146 : vector<8x384xf32>
    %cst_50 = arith.constant 1.000000e+00 : f32
    %148 = vector.broadcast %cst_50 : f32 to vector<8x384xf32>
    %149 = arith.addf %148, %147 : vector<8x384xf32>
    %150 = arith.divf %148, %149 : vector<8x384xf32>
    %151 = vector.extract_strided_slice %150 {offsets = [0, 0], sizes = [8, 128], strides = [1, 1]} : vector<8x384xf32> to vector<8x128xf32>
    %152 = vector.extract_strided_slice %150 {offsets = [0, 128], sizes = [8, 128], strides = [1, 1]} : vector<8x384xf32> to vector<8x128xf32>
    %153 = vector.extract_strided_slice %150 {offsets = [0, 256], sizes = [8, 128], strides = [1, 1]} : vector<8x384xf32> to vector<8x128xf32>
    %154 = vector.extract_strided_slice %144 {offsets = [0, 384], sizes = [8, 128], strides = [1, 1]} : vector<8x512xf32> to vector<8x128xf32>
    %155 = math.tanh %154 : vector<8x128xf32>
    %156 = arith.mulf %152, %133 : vector<8x128xf32>
    %157 = arith.mulf %151, %155 : vector<8x128xf32>
    %158 = arith.addf %156, %157 : vector<8x128xf32>
    %159 = math.tanh %158 : vector<8x128xf32>
    %160 = arith.mulf %153, %159 : vector<8x128xf32>
    %161 = arith.index_cast %c5_i32 : i32 to index
    %c0_51 = arith.constant 0 : index
    %c0_52 = arith.constant 0 : index
    %162 = vector.load %arg6[%161, %c0_51, %c0_52] : memref<8x8x128xf32, #tpu.memory_space<vmem>>, vector<1x8x128xf32>
    %163 = vector.shape_cast %162 : vector<1x8x128xf32> to vector<8x128xf32>
    %164 = vector.shape_cast %160 : vector<8x128xf32> to vector<1x8x128xf32>
    tpu.vector_store %arg6[%161, %c0_51, %c0_52], %164 {strides = array<i32>} : memref<8x8x128xf32, #tpu.memory_space<vmem>>, vector<1x8x128xf32>,
    %c6_i32 = arith.constant 6 : i32
    %165 = arith.index_cast %c6_i32 : i32 to index
    %c0_53 = arith.constant 0 : index
    %c0_54 = arith.constant 0 : index
    %166 = vector.load %arg10[%165, %c0_53, %c0_54] : memref<8x8x512xf32, #tpu.memory_space<vmem>>, vector<1x8x512xf32>
    %167 = vector.shape_cast %166 : vector<1x8x512xf32> to vector<8x512xf32>
    %cst_55 = arith.constant dense<0.000000e+00> : vector<8x512xf32>
    %168 = tpu.matmul %160, %12, %cst_55 {dimension_numbers = #tpu.dot_dimension_numbers<[1], [0], [0], [1], [0, 0, 1, 1], [], []>} : vector<8x128xf32>, vector<128x512xf32>, vector<8x512xf32> -> vector<8x512xf32>
    %169 = arith.addf %167, %168 : vector<8x512xf32>
    %170 = vector.extract_strided_slice %169 {offsets = [0, 0], sizes = [8, 384], strides = [1, 1]} : vector<8x512xf32> to vector<8x384xf32>
    %171 = arith.negf %170 : vector<8x384xf32>
    %172 = math.exp %171 : vector<8x384xf32>
    %cst_56 = arith.constant 1.000000e+00 : f32
    %173 = vector.broadcast %cst_56 : f32 to vector<8x384xf32>
    %174 = arith.addf %173, %172 : vector<8x384xf32>
    %175 = arith.divf %173, %174 : vector<8x384xf32>
    %176 = vector.extract_strided_slice %175 {offsets = [0, 0], sizes = [8, 128], strides = [1, 1]} : vector<8x384xf32> to vector<8x128xf32>
    %177 = vector.extract_strided_slice %175 {offsets = [0, 128], sizes = [8, 128], strides = [1, 1]} : vector<8x384xf32> to vector<8x128xf32>
    %178 = vector.extract_strided_slice %175 {offsets = [0, 256], sizes = [8, 128], strides = [1, 1]} : vector<8x384xf32> to vector<8x128xf32>
    %179 = vector.extract_strided_slice %169 {offsets = [0, 384], sizes = [8, 128], strides = [1, 1]} : vector<8x512xf32> to vector<8x128xf32>
    %180 = math.tanh %179 : vector<8x128xf32>
    %181 = arith.mulf %177, %158 : vector<8x128xf32>
    %182 = arith.mulf %176, %180 : vector<8x128xf32>
    %183 = arith.addf %181, %182 : vector<8x128xf32>
    %184 = math.tanh %183 : vector<8x128xf32>
    %185 = arith.mulf %178, %184 : vector<8x128xf32>
    %186 = arith.index_cast %c6_i32 : i32 to index
    %c0_57 = arith.constant 0 : index
    %c0_58 = arith.constant 0 : index
    %187 = vector.load %arg6[%186, %c0_57, %c0_58] : memref<8x8x128xf32, #tpu.memory_space<vmem>>, vector<1x8x128xf32>
    %188 = vector.shape_cast %187 : vector<1x8x128xf32> to vector<8x128xf32>
    %189 = vector.shape_cast %185 : vector<8x128xf32> to vector<1x8x128xf32>
    tpu.vector_store %arg6[%186, %c0_57, %c0_58], %189 {strides = array<i32>} : memref<8x8x128xf32, #tpu.memory_space<vmem>>, vector<1x8x128xf32>,
    %c7_i32 = arith.constant 7 : i32
    %190 = arith.index_cast %c7_i32 : i32 to index
    %c0_59 = arith.constant 0 : index
    %c0_60 = arith.constant 0 : index
    %191 = vector.load %arg10[%190, %c0_59, %c0_60] : memref<8x8x512xf32, #tpu.memory_space<vmem>>, vector<1x8x512xf32>
    %192 = vector.shape_cast %191 : vector<1x8x512xf32> to vector<8x512xf32>
    %cst_61 = arith.constant dense<0.000000e+00> : vector<8x512xf32>
    %193 = tpu.matmul %185, %12, %cst_61 {dimension_numbers = #tpu.dot_dimension_numbers<[1], [0], [0], [1], [0, 0, 1, 1], [], []>} : vector<8x128xf32>, vector<128x512xf32>, vector<8x512xf32> -> vector<8x512xf32>
    %194 = arith.addf %192, %193 : vector<8x512xf32>
    %195 = vector.extract_strided_slice %194 {offsets = [0, 0], sizes = [8, 384], strides = [1, 1]} : vector<8x512xf32> to vector<8x384xf32>
    %196 = arith.negf %195 : vector<8x384xf32>
    %197 = math.exp %196 : vector<8x384xf32>
    %cst_62 = arith.constant 1.000000e+00 : f32
    %198 = vector.broadcast %cst_62 : f32 to vector<8x384xf32>
    %199 = arith.addf %198, %197 : vector<8x384xf32>
    %200 = arith.divf %198, %199 : vector<8x384xf32>
    %201 = vector.extract_strided_slice %200 {offsets = [0, 0], sizes = [8, 128], strides = [1, 1]} : vector<8x384xf32> to vector<8x128xf32>
    %202 = vector.extract_strided_slice %200 {offsets = [0, 128], sizes = [8, 128], strides = [1, 1]} : vector<8x384xf32> to vector<8x128xf32>
    %203 = vector.extract_strided_slice %200 {offsets = [0, 256], sizes = [8, 128], strides = [1, 1]} : vector<8x384xf32> to vector<8x128xf32>
    %204 = vector.extract_strided_slice %194 {offsets = [0, 384], sizes = [8, 128], strides = [1, 1]} : vector<8x512xf32> to vector<8x128xf32>
    %205 = math.tanh %204 : vector<8x128xf32>
    %206 = arith.mulf %202, %183 : vector<8x128xf32>
    %207 = arith.mulf %201, %205 : vector<8x128xf32>
    %208 = arith.addf %206, %207 : vector<8x128xf32>
    %209 = math.tanh %208 : vector<8x128xf32>
    %210 = arith.mulf %203, %209 : vector<8x128xf32>
    %211 = arith.index_cast %c7_i32 : i32 to index
    %c0_63 = arith.constant 0 : index
    %c0_64 = arith.constant 0 : index
    %212 = vector.load %arg6[%211, %c0_63, %c0_64] : memref<8x8x128xf32, #tpu.memory_space<vmem>>, vector<1x8x128xf32>
    %213 = vector.shape_cast %212 : vector<1x8x128xf32> to vector<8x128xf32>
    %214 = vector.shape_cast %210 : vector<8x128xf32> to vector<1x8x128xf32>
    tpu.vector_store %arg6[%211, %c0_63, %c0_64], %214 {strides = array<i32>} : memref<8x8x128xf32, #tpu.memory_space<vmem>>, vector<1x8x128xf32>,
    %c8_i32 = arith.constant 8 : i32
    %c0_65 = arith.constant 0 : index
    %c0_66 = arith.constant 0 : index
    %215 = vector.load %arg8[%c0_65, %c0_66] : memref<8x128xf32, #tpu.memory_space<vmem>>, vector<8x128xf32>
    tpu.vector_store %arg8[%c0_65, %c0_66], %210 {strides = array<i32>} : memref<8x128xf32, #tpu.memory_space<vmem>>, vector<8x128xf32>,
    %c0_67 = arith.constant 0 : index
    %c0_68 = arith.constant 0 : index
    %216 = vector.load %arg9[%c0_67, %c0_68] : memref<8x128xf32, #tpu.memory_space<vmem>>, vector<8x128xf32>
    tpu.vector_store %arg9[%c0_67, %c0_68], %208 {strides = array<i32>} : memref<8x128xf32, #tpu.memory_space<vmem>>, vector<8x128xf32>,
    %c0_i32_69 = arith.constant 0 : i32
    %217 = arith.cmpi eq, %arg1, %c0_i32_69 : i32
    %218 = arith.extui %217 : i1 to i32
    %c0_i32_70 = arith.constant 0 : i32
    %219 = arith.cmpi ne, %218, %c0_i32_70 : i32
    scf.if %219 {
      %c0_71 = arith.constant 0 : index
      %c0_72 = arith.constant 0 : index
      %220 = vector.load %arg7[%c0_71, %c0_72] : memref<8x128xf32, #tpu.memory_space<vmem>>, vector<8x128xf32>
      tpu.vector_store %arg7[%c0_71, %c0_72], %208 {strides = array<i32>} : memref<8x128xf32, #tpu.memory_space<vmem>>, vector<8x128xf32>,
    } else {
    }
    return
  }
  func.func @transform_0(%arg0: i32, %arg1: i32) -> (i32, i32, i32) {
    %c0_i32 = arith.constant 0 : i32
    %c0_i32_0 = arith.constant 0 : i32
    return %arg1, %arg0, %c0_i32 : i32, i32, i32
  }
  func.func @transform_1(%arg0: i32, %arg1: i32) -> (i32, i32) {
    %c0_i32 = arith.constant 0 : i32
    %c0_i32_0 = arith.constant 0 : i32
    %c0_i32_1 = arith.constant 0 : i32
    return %c0_i32, %c0_i32_0 : i32, i32
  }
  func.func @transform_2(%arg0: i32, %arg1: i32) -> (i32, i32) {
    %c0_i32 = arith.constant 0 : i32
    %c0_i32_0 = arith.constant 0 : i32
    %c0_i32_1 = arith.constant 0 : i32
    return %c0_i32, %c0_i32_0 : i32, i32
  }
  func.func @transform_3(%arg0: i32, %arg1: i32) -> (i32, i32) {
    %c0_i32 = arith.constant 0 : i32
    %c0_i32_0 = arith.constant 0 : i32
    %c0_i32_1 = arith.constant 0 : i32
    return %c0_i32, %c0_i32_0 : i32, i32
  }
  func.func @transform_4(%arg0: i32, %arg1: i32) -> (i32, i32, i32) {
    %c0_i32 = arith.constant 0 : i32
    %c0_i32_0 = arith.constant 0 : i32
    return %arg1, %arg0, %c0_i32 : i32, i32, i32
  }
  func.func @transform_5(%arg0: i32, %arg1: i32) -> (i32, i32) {
    %c0_i32 = arith.constant 0 : i32
    %c0_i32_0 = arith.constant 0 : i32
    return %arg0, %c0_i32 : i32, i32
  }
}

</mosaic_0001>

<llo_original>
// kernel: tpu_custom_call.1
$region0: #{tpu_custom_call.1}
  #allocation0 [shape = 'u32[]', space=smem, size = 0x4, offset = 0x4, fixed_abs, tag = 'smem constant byte address 0x4 - core index']
  #allocation1 [shape = 'u32[144,128]{1,0:T(1,128)}', space=vmem, size = 0x12000, scoped, tag = 'internal scratch']
  #allocation2 [shape = 'f32[8,128]{1,0:T(8,128)}', space=vmem, size = 0x1000, scoped, tag = 'scratch operand']
  #allocation3 [shape = 'f32[8,128]{1,0:T(8,128)}', space=vmem, size = 0x1000, scoped, tag = 'scratch operand']
  #allocation4 [shape = 'f32[8,8,512]{2,1,0:T(8,128)}', space=vmem, size = 0x20000, scoped, tag = 'scratch operand']
  %s0 = inlined_call_operand.vmem [shape: f32[8,8,4], index: 0, kind: input, shape index: {}]
  %s1 = inlined_call_operand.vmem [shape: f32[4,512], index: 1, kind: input, shape index: {}]
  %s2 = inlined_call_operand.hbm [shape: f32[128,512], index: 2, kind: input, shape index: {}]
  %s3 = inlined_call_operand.vmem [shape: f32[1,512], index: 3, kind: input, shape index: {}]
  %s4 = inlined_call_operand.hbm [shape: f32[8,8,128], index: 4, kind: output, shape index: {0}]
  %s5 = inlined_call_operand.hbm [shape: f32[8,128], index: 5, kind: output, shape index: {1}]
  %6 = xla_tuple %s4, %s5
  %s7 = sld [smem:[#allocation0]]
  $region46: #{tpu_custom_call.1} parent=0
    _
  %s9 = ssub.s32 1, %s7
  %s10 = scalar_select 0, %s9, %s7
  $region1: #{tpu_custom_call.1} parent=0
    #allocation5 [shape = 'u8[262144]{0}', space=vmem, size = 0x40000, scoped, tag = 'input window, operand 2, single buffered']
    #allocation6 [shape = 's32[1]{0}', space=sflag, size = 0x4, scoped, tag = 'scoped memory for tpu_custom_call.1']
    #allocation7 [shape = 's32[1]{0}', space=sflag, size = 0x4, scoped, tag = 'scoped memory for tpu_custom_call.1']
    #allocation8 [shape = 'u8[32768]{0}', space=vmem, size = 0x8000, scoped, tag = 'output window, operand 0, single buffered']
    #allocation9 [shape = 'u8[4096]{0}', space=vmem, size = 0x1000, scoped, tag = 'output window, operand 1, single buffered']
    #allocation10 [shape = 's32[1]{0}', space=sflag, size = 0x4, scoped, tag = 'scoped memory for tpu_custom_call.1']
    %11 = vsyncpa [#allocation6], 0
    %12 = vsyncpa [#allocation7], 0
    %13 = vsyncpa [#allocation10], 0
    // Predicated region
    $region2: #{tpu_custom_call.1} parent=1 // pred_check
      _
    $region3: #{tpu_custom_call.1} parent=1 // pred_check_branch
      %15 = sbr.rel (0) target = $region5
    $region4: #{tpu_custom_call.1} parent=1 // pred_region
      _
    $region5: #{tpu_custom_call.1} parent=1 // pred_fallthru
      _
    // Predicated region
    $region6: #{tpu_custom_call.1} parent=1 // pred_check
      _
    $region7: #{tpu_custom_call.1} parent=1 // pred_check_branch
      %17 = sbr.rel (0) target = $region9
    $region8: #{tpu_custom_call.1} parent=1 // pred_region
      _
    $region9: #{tpu_custom_call.1} parent=1 // pred_fallthru
      _
    // Predicated region
    $region10: #{tpu_custom_call.1} parent=1 // pred_check
      _
    $region11: #{tpu_custom_call.1} parent=1 // pred_check_branch
      %19 = sbr.rel (0) target = $region13
    $region12: #{tpu_custom_call.1} parent=1 // pred_region
      %s21 = ssub.s32 8192, 8192
      %22 = vsyncadd [#allocation6], %s21
      %s23 = sshll.u32 [#allocation5], 4
      %s24 = int_to_ptr.vmem [resolvable:$true] %s23
      %29 = dma.hbm_to_vmem [thread:$0]  %s2, 8192, %s24, [#allocation6], 512, 512, 32
    $region13: #{tpu_custom_call.1} parent=1 // pred_fallthru
      _
    // Predicated region
    $region14: #{tpu_custom_call.1} parent=1 // pred_check
      _
    $region15: #{tpu_custom_call.1} parent=1 // pred_check_branch
      %31 = sbr.rel (0) target = $region17
    $region16: #{tpu_custom_call.1} parent=1 // pred_region
      _
    $region17: #{tpu_custom_call.1} parent=1 // pred_fallthru
      _
    // Predicated region
    $region18: #{tpu_custom_call.1} parent=1 // pred_check
      _
    $region19: #{tpu_custom_call.1} parent=1 // pred_check_branch
      %33 = sbr.rel (0) target = $region21
    $region20: #{tpu_custom_call.1} parent=1 // pred_region
      %34 = dma.done [#allocation6], 8192
    $region21: #{tpu_custom_call.1} parent=1 // pred_fallthru
      _
    %p35 = scmp.eq.s32.totalorder 0, 0
    // Predicated region
    $region22: #{tpu_custom_call.1} parent=1 // pred_check
      %p36 = pneg %p35
    $region23: #{tpu_custom_call.1} parent=1 // pred_check_branch
      %38 = sbr.rel (%p36) target = $region25
    $region24: #{tpu_custom_call.1} parent=1 // pred_region
      %39 = vst [vmem:[#allocation2] sm:$0xff] 0.0
      %40 = vst [vmem:[#allocation3] sm:$0xff] 0.0
    $region25: #{tpu_custom_call.1} parent=1 // pred_fallthru
      _
    %v41 = vld [vmem:[%s0] sm:$0xff]
    %v42 = vld [vmem:[%s0 + $0x8] sm:$0xff]
    %v43 = vld [vmem:[%s0 + $0x10] sm:$0xff]
    %v44 = vld [vmem:[%s0 + $0x18] sm:$0xff]
    %v45 = vld [vmem:[%s0 + $0x20] sm:$0xff]
    %v46 = vld [vmem:[%s0 + $0x28] sm:$0xff]
    %v47 = vld [vmem:[%s0 + $0x30] sm:$0xff]
    %v48 = vld [vmem:[%s0 + $0x38] sm:$0xff]
    %v49 = vld [vmem:[%s1] sm:$0xff]
    %v50 = vld [vmem:[%s1 + $0x8] sm:$0xff]
    %v51 = vld [vmem:[%s3] sm:$0xf]
    %v53 = vlaneseq
    %v54 = vshrl.u32 %v53, 7
    %v55 = vsub.s32 0, %v54
    %v56 = vrot.slane %v51, %v55
    %v57 = vlaneseq
    %v58 = vshrl.u32 %v57, 7
    %v59 = vsub.s32 1, %v58
    %v60 = vrot.slane %v51, %v59
    %v61 = vlaneseq
    %v62 = vshrl.u32 %v61, 7
    %v63 = vsub.s32 2, %v62
    %v64 = vrot.slane %v51, %v63
    %v65 = vlaneseq
    %v66 = vshrl.u32 %v65, 7
    %v67 = vsub.s32 3, %v66
    %v68 = vrot.slane %v51, %v67
    %v75 = vcombine.high %v49, %v49
    %v76 = vcombine.high %v50, %v50
    %vm77 = vcmask 31744
    %v79 = vsel %vm77, %v41, 0
    %v82 = vsel %vm77, %v42, 0
    %v85 = vsel %vm77, %v43, 0
    %v88 = vsel %vm77, %v44, 0
    %v91 = vsel %vm77, %v45, 0
    %v94 = vsel %vm77, %v46, 0
    %v97 = vsel %vm77, %v47, 0
    %v100 = vsel %vm77, %v48, 0
    %vm102 = vcmask 1043456
    %v103 = vsel %vm102, %v49, 0
    %v105 = vsel %vm102, %v75, 0
    %v107 = vsel %vm102, %v50, 0
    %v109 = vsel %vm102, %v76, 0
    %111 = vmatprep.subr.mxu0 %v105
    %112 = vmatpush1.msra.mxu0 %v103
    %113 = vmatprep.subr.mxu0 0.0
    %114 = vmatpush1.msra.mxu0 0.0
    %115 = vmatprep.subr.mxu0 0.0
    %116 = vmatpush1.msra.mxu0 0.0
    %117 = vmatprep.subr.mxu0 0.0
    %118 = vmatpush1.msra.mxu0 0.0
    %119 = vmatprep.subr.mxu0 0.0
    %120 = vmatpush1.msra.mxu0 0.0
    %121 = vmatprep.subr.mxu0 0.0
    %122 = vmatpush1.msra.mxu0 0.0
    %123 = vmatprep.subr.mxu0 0.0
    %124 = vmatpush1.msra.mxu0 0.0
    %125 = vmatprep.subr.mxu0 0.0
    %126 = vmatpush1.msra.mxu0 0.0
    %127 = vmatprep.subr.mxu0 0.0
    %128 = vmatpush1.msra.mxu0 0.0
    %129 = vmatprep.subr.mxu0 0.0
    %130 = vmatpush1.msra.mxu0 0.0
    %131 = vmatprep.subr.mxu0 0.0
    %132 = vmatpush1.msra.mxu0 0.0
    %133 = vmatprep.subr.mxu0 0.0
    %134 = vmatpush1.msra.mxu0 0.0
    %135 = vmatprep.subr.mxu0 0.0
    %136 = vmatpush1.msra.mxu0 0.0
    %137 = vmatprep.subr.mxu0 0.0
    %138 = vmatpush1.msra.mxu0 0.0
    %139 = vmatprep.subr.mxu0 0.0
    %140 = vmatpush1.msra.mxu0 0.0
    %141 = vmatprep.subr.mxu0 0.0
    %142 = vmatpush1.msra.mxu0 0.0
    %143 = vmatprep.subr.mxu0 0.0
    %144 = vmatpush1.msra.mxu0 0.0
    %145 = vmatprep.subr.mxu0 0.0
    %146 = vmatpush1.msra.mxu0 0.0
    %147 = vmatprep.subr.mxu0 0.0
    %148 = vmatpush1.msra.mxu0 0.0
    %149 = vmatprep.subr.mxu0 0.0
    %150 = vmatpush1.msra.mxu0 0.0
    %151 = vmatprep.subr.mxu0 0.0
    %152 = vmatpush1.msra.mxu0 0.0
    %153 = vmatprep.subr.mxu0 0.0
    %154 = vmatpush1.msra.mxu0 0.0
    %155 = vmatprep.subr.mxu0 0.0
    %156 = vmatpush1.msra.mxu0 0.0
    %157 = vmatprep.subr.mxu0 0.0
    %158 = vmatpush1.msra.mxu0 0.0
    %159 = vmatprep.subr.mxu0 0.0
    %160 = vmatpush1.msra.mxu0 0.0
    %161 = vmatprep.subr.mxu0 0.0
    %162 = vmatpush1.msra.mxu0 0.0
    %163 = vmatprep.subr.mxu0 0.0
    %164 = vmatpush1.msra.mxu0 0.0
    %165 = vmatprep.subr.mxu0 0.0
    %166 = vmatpush1.msra.mxu0 0.0
    %167 = vmatprep.subr.mxu0 0.0
    %168 = vmatpush1.msra.mxu0 0.0
    %169 = vmatprep.subr.mxu0 0.0
    %170 = vmatpush1.msra.mxu0 0.0
    %171 = vmatprep.subr.mxu0 0.0
    %172 = vmatpush1.msra.mxu0 0.0
    %173 = vmatprep.subr.mxu0 0.0
    %174 = vmatpush1.msra.mxu0 0.0
    %175 = vmatprep.mubr.f32.mxu0 0.0
    %176 = vmatmul.mubr.f32.gmra.mrb[0].mxu0 %v79
    %v177 = vpop.f32.mrb[0].mxu0
    %v178 = vadd.f32 %v56, %v177
    %v179 = vpop.f32.mrb[0].mxu0
    %v180 = vadd.f32 %v60, %v179
    %181 = vmatprep.mubr.f32.mxu0 0.0
    %182 = vmatmul.mubr.f32.gmra.mrb[0].mxu0 %v82
    %v183 = vpop.f32.mrb[0].mxu0
    %v184 = vadd.f32 %v56, %v183
    %v185 = vpop.f32.mrb[0].mxu0
    %v186 = vadd.f32 %v60, %v185
    %187 = vmatprep.mubr.f32.mxu0 0.0
    %188 = vmatmul.mubr.f32.gmra.mrb[0].mxu0 %v85
    %v189 = vpop.f32.mrb[0].mxu0
    %v190 = vadd.f32 %v56, %v189
    %v191 = vpop.f32.mrb[0].mxu0
    %v192 = vadd.f32 %v60, %v191
    %193 = vmatprep.mubr.f32.mxu0 0.0
    %194 = vmatmul.mubr.f32.gmra.mrb[0].mxu0 %v88
    %v195 = vpop.f32.mrb[0].mxu0
    %v196 = vadd.f32 %v56, %v195
    %v197 = vpop.f32.mrb[0].mxu0
    %v198 = vadd.f32 %v60, %v197
    %199 = vmatprep.mubr.f32.mxu0 0.0
    %200 = vmatmul.mubr.f32.gmra.mrb[0].mxu0 %v91
    %v201 = vpop.f32.mrb[0].mxu0
    %v202 = vadd.f32 %v56, %v201
    %v203 = vpop.f32.mrb[0].mxu0
    %v204 = vadd.f32 %v60, %v203
    %205 = vmatprep.mubr.f32.mxu0 0.0
    %206 = vmatmul.mubr.f32.gmra.mrb[0].mxu0 %v94
    %v207 = vpop.f32.mrb[0].mxu0
    %v208 = vadd.f32 %v56, %v207
    %v209 = vpop.f32.mrb[0].mxu0
    %v210 = vadd.f32 %v60, %v209
    %211 = vmatprep.mubr.f32.mxu0 0.0
    %212 = vmatmul.mubr.f32.gmra.mrb[0].mxu0 %v97
    %v213 = vpop.f32.mrb[0].mxu0
    %v214 = vadd.f32 %v56, %v213
    %v215 = vpop.f32.mrb[0].mxu0
    %v216 = vadd.f32 %v60, %v215
    %217 = vmatprep.mubr.f32.mxu0 0.0
    %218 = vmatmul.mubr.f32.gmra.mrb[0].mxu0 %v100
    %v219 = vpop.f32.mrb[0].mxu0
    %v220 = vadd.f32 %v56, %v219
    %v221 = vpop.f32.mrb[0].mxu0
    %v222 = vadd.f32 %v60, %v221
    %223 = vdwg.mxu0
    %224 = vmatprep.subr.mxu0 %v109
    %225 = vmatpush1.msra.mxu0 %v107
    %226 = vmatprep.subr.mxu0 0.0
    %227 = vmatpush1.msra.mxu0 0.0
    %228 = vmatprep.subr.mxu0 0.0
    %229 = vmatpush1.msra.mxu0 0.0
    %230 = vmatprep.subr.mxu0 0.0
    %231 = vmatpush1.msra.mxu0 0.0
    %232 = vmatprep.subr.mxu0 0.0
    %233 = vmatpush1.msra.mxu0 0.0
    %234 = vmatprep.subr.mxu0 0.0
    %235 = vmatpush1.msra.mxu0 0.0
    %236 = vmatprep.subr.mxu0 0.0
    %237 = vmatpush1.msra.mxu0 0.0
    %238 = vmatprep.subr.mxu0 0.0
    %239 = vmatpush1.msra.mxu0 0.0
    %240 = vmatprep.subr.mxu0 0.0
    %241 = vmatpush1.msra.mxu0 0.0
    %242 = vmatprep.subr.mxu0 0.0
    %243 = vmatpush1.msra.mxu0 0.0
    %244 = vmatprep.subr.mxu0 0.0
    %245 = vmatpush1.msra.mxu0 0.0
    %246 = vmatprep.subr.mxu0 0.0
    %247 = vmatpush1.msra.mxu0 0.0
    %248 = vmatprep.subr.mxu0 0.0
    %249 = vmatpush1.msra.mxu0 0.0
    %250 = vmatprep.subr.mxu0 0.0
    %251 = vmatpush1.msra.mxu0 0.0
    %252 = vmatprep.subr.mxu0 0.0
    %253 = vmatpush1.msra.mxu0 0.0
    %254 = vmatprep.subr.mxu0 0.0
    %255 = vmatpush1.msra.mxu0 0.0
    %256 = vmatprep.subr.mxu0 0.0
    %257 = vmatpush1.msra.mxu0 0.0
    %258 = vmatprep.subr.mxu0 0.0
    %259 = vmatpush1.msra.mxu0 0.0
    %260 = vmatprep.subr.mxu0 0.0
    %261 = vmatpush1.msra.mxu0 0.0
    %262 = vmatprep.subr.mxu0 0.0
    %263 = vmatpush1.msra.mxu0 0.0
    %264 = vmatprep.subr.mxu0 0.0
    %265 = vmatpush1.msra.mxu0 0.0
    %266 = vmatprep.subr.mxu0 0.0
    %267 = vmatpush1.msra.mxu0 0.0
    %268 = vmatprep.subr.mxu0 0.0
    %269 = vmatpush1.msra.mxu0 0.0
    %270 = vmatprep.subr.mxu0 0.0
    %271 = vmatpush1.msra.mxu0 0.0
    %272 = vmatprep.subr.mxu0 0.0
    %273 = vmatpush1.msra.mxu0 0.0
    %274 = vmatprep.subr.mxu0 0.0
    %275 = vmatpush1.msra.mxu0 0.0
    %276 = vmatprep.subr.mxu0 0.0
    %277 = vmatpush1.msra.mxu0 0.0
    %278 = vmatprep.subr.mxu0 0.0
    %279 = vmatpush1.msra.mxu0 0.0
    %280 = vmatprep.subr.mxu0 0.0
    %281 = vmatpush1.msra.mxu0 0.0
    %282 = vmatprep.subr.mxu0 0.0
    %283 = vmatpush1.msra.mxu0 0.0
    %284 = vmatprep.subr.mxu0 0.0
    %285 = vmatpush1.msra.mxu0 0.0
    %286 = vmatprep.subr.mxu0 0.0
    %287 = vmatpush1.msra.mxu0 0.0
    %288 = vmatprep.mubr.f32.mxu0 0.0
    %289 = vmatmul.mubr.f32.gmra.mrb[0].mxu0 %v79
    %v290 = vpop.f32.mrb[0].mxu0
    %v291 = vadd.f32 %v64, %v290
    %v292 = vpop.f32.mrb[0].mxu0
    %v293 = vadd.f32 %v68, %v292
    %294 = vmatprep.mubr.f32.mxu0 0.0
    %295 = vmatmul.mubr.f32.gmra.mrb[0].mxu0 %v82
    %v296 = vpop.f32.mrb[0].mxu0
    %v297 = vadd.f32 %v64, %v296
    %v298 = vpop.f32.mrb[0].mxu0
    %v299 = vadd.f32 %v68, %v298
    %300 = vmatprep.mubr.f32.mxu0 0.0
    %301 = vmatmul.mubr.f32.gmra.mrb[0].mxu0 %v85
    %v302 = vpop.f32.mrb[0].mxu0
    %v303 = vadd.f32 %v64, %v302
    %v304 = vpop.f32.mrb[0].mxu0
    %v305 = vadd.f32 %v68, %v304
    %306 = vmatprep.mubr.f32.mxu0 0.0
    %307 = vmatmul.mubr.f32.gmra.mrb[0].mxu0 %v88
    %v308 = vpop.f32.mrb[0].mxu0
    %v309 = vadd.f32 %v64, %v308
    %v310 = vpop.f32.mrb[0].mxu0
    %v311 = vadd.f32 %v68, %v310
    %312 = vmatprep.mubr.f32.mxu0 0.0
    %313 = vmatmul.mubr.f32.gmra.mrb[0].mxu0 %v91
    %v314 = vpop.f32.mrb[0].mxu0
    %v315 = vadd.f32 %v64, %v314
    %v316 = vpop.f32.mrb[0].mxu0
    %v317 = vadd.f32 %v68, %v316
    %318 = vmatprep.mubr.f32.mxu0 0.0
    %319 = vmatmul.mubr.f32.gmra.mrb[0].mxu0 %v94
    %v320 = vpop.f32.mrb[0].mxu0
    %v321 = vadd.f32 %v64, %v320
    %v322 = vpop.f32.mrb[0].mxu0
    %v323 = vadd.f32 %v68, %v322
    %324 = vmatprep.mubr.f32.mxu0 0.0
    %325 = vmatmul.mubr.f32.gmra.mrb[0].mxu0 %v97
    %v326 = vpop.f32.mrb[0].mxu0
    %v327 = vadd.f32 %v64, %v326
    %v328 = vpop.f32.mrb[0].mxu0
    %v329 = vadd.f32 %v68, %v328
    %330 = vmatprep.mubr.f32.mxu0 0.0
    %331 = vmatmul.mubr.f32.gmra.mrb[0].mxu0 %v100
    %v332 = vpop.f32.mrb[0].mxu0
    %v333 = vadd.f32 %v64, %v332
    %v334 = vpop.f32.mrb[0].mxu0
    %v335 = vadd.f32 %v68, %v334
    %336 = vdwg.mxu0
    %337 = vst [vmem:[#allocation4] sm:$0xff] %v178
    %338 = vst [vmem:[#allocation4 + $0x8] sm:$0xff] %v180
    %339 = vst [vmem:[#allocation4 + $0x10] sm:$0xff] %v291
    %340 = vst [vmem:[#allocation4 + $0x18] sm:$0xff] %v293
    %341 = vst [vmem:[#allocation4 + $0x20] sm:$0xff] %v184
    %342 = vst [vmem:[#allocation4 + $0x28] sm:$0xff] %v186
    %343 = vst [vmem:[#allocation4 + $0x30] sm:$0xff] %v297
    %344 = vst [vmem:[#allocation4 + $0x38] sm:$0xff] %v299
    %345 = vst [vmem:[#allocation4 + $0x40] sm:$0xff] %v190
    %346 = vst [vmem:[#allocation4 + $0x48] sm:$0xff] %v192
    %347 = vst [vmem:[#allocation4 + $0x50] sm:$0xff] %v303
    %348 = vst [vmem:[#allocation4 + $0x58] sm:$0xff] %v305
    %349 = vst [vmem:[#allocation4 + $0x60] sm:$0xff] %v196
    %350 = vst [vmem:[#allocation4 + $0x68] sm:$0xff] %v198
    %351 = vst [vmem:[#allocation4 + $0x70] sm:$0xff] %v309
    %352 = vst [vmem:[#allocation4 + $0x78] sm:$0xff] %v311
    %353 = vst [vmem:[#allocation4 + $0x80] sm:$0xff] %v202
    %354 = vst [vmem:[#allocation4 + $0x88] sm:$0xff] %v204
    %355 = vst [vmem:[#allocation4 + $0x90] sm:$0xff] %v315
    %356 = vst [vmem:[#allocation4 + $0x98] sm:$0xff] %v317
    %357 = vst [vmem:[#allocation4 + $0xa0] sm:$0xff] %v208
    %358 = vst [vmem:[#allocation4 + $0xa8] sm:$0xff] %v210
    %359 = vst [vmem:[#allocation4 + $0xb0] sm:$0xff] %v321
    %360 = vst [vmem:[#allocation4 + $0xb8] sm:$0xff] %v323
    %361 = vst [vmem:[#allocation4 + $0xc0] sm:$0xff] %v214
    %362 = vst [vmem:[#allocation4 + $0xc8] sm:$0xff] %v216
    %363 = vst [vmem:[#allocation4 + $0xd0] sm:$0xff] %v327
    %364 = vst [vmem:[#allocation4 + $0xd8] sm:$0xff] %v329
    %365 = vst [vmem:[#allocation4 + $0xe0] sm:$0xff] %v220
    %366 = vst [vmem:[#allocation4 + $0xe8] sm:$0xff] %v222
    %367 = vst [vmem:[#allocation4 + $0xf0] sm:$0xff] %v333
    %368 = vst [vmem:[#allocation4 + $0xf8] sm:$0xff] %v335
    %v369 = vld [vmem:[#allocation5] sm:$0xff]
    %v370 = vld [vmem:[#allocation5 + $0x8] sm:$0xff]
    %v371 = vld [vmem:[#allocation5 + $0x10] sm:$0xff]
    %v372 = vld [vmem:[#allocation5 + $0x18] sm:$0xff]
    %v373 = vld [vmem:[#allocation5 + $0x20] sm:$0xff]
    %v374 = vld [vmem:[#allocation5 + $0x28] sm:$0xff]
    %v375 = vld [vmem:[#allocation5 + $0x30] sm:$0xff]
    %v376 = vld [vmem:[#allocation5 + $0x38] sm:$0xff]
    %v377 = vld [vmem:[#allocation5 + $0x40] sm:$0xff]
    %v378 = vld [vmem:[#allocation5 + $0x48] sm:$0xff]
    %v379 = vld [vmem:[#allocation5 + $0x50] sm:$0xff]
    %v380 = vld [vmem:[#allocation5 + $0x58] sm:$0xff]
    %v381 = vld [vmem:[#allocation5 + $0x60] sm:$0xff]
    %v382 = vld [vmem:[#allocation5 + $0x68] sm:$0xff]
    %v383 = vld [vmem:[#allocation5 + $0x70] sm:$0xff]
    %v384 = vld [vmem:[#allocation5 + $0x78] sm:$0xff]
    %v385 = vld [vmem:[#allocation5 + $0x80] sm:$0xff]
    %v386 = vld [vmem:[#allocation5 + $0x88] sm:$0xff]
    %v387 = vld [vmem:[#allocation5 + $0x90] sm:$0xff]
    %v388 = vld [vmem:[#allocation5 + $0x98] sm:$0xff]
    %v389 = vld [vmem:[#allocation5 + $0xa0] sm:$0xff]
    %v390 = vld [vmem:[#allocation5 + $0xa8] sm:$0xff]
    %v391 = vld [vmem:[#allocation5 + $0xb0] sm:$0xff]
    %v392 = vld [vmem:[#allocation5 + $0xb8] sm:$0xff]
    %v393 = vld [vmem:[#allocation5 + $0xc0] sm:$0xff]
    %v394 = vld [vmem:[#allocation5 + $0xc8] sm:$0xff]
    %v395 = vld [vmem:[#allocation5 + $0xd0] sm:$0xff]
    %v396 = vld [vmem:[#allocation5 + $0xd8] sm:$0xff]
    %v397 = vld [vmem:[#allocation5 + $0xe0] sm:$0xff]
    %v398 = vld [vmem:[#allocation5 + $0xe8] sm:$0xff]
    %v399 = vld [vmem:[#allocation5 + $0xf0] sm:$0xff]
    %v400 = vld [vmem:[#allocation5 + $0xf8] sm:$0xff]
    %v401 = vld [vmem:[#allocation5 + $0x100] sm:$0xff]
    %v402 = vld [vmem:[#allocation5 + $0x108] sm:$0xff]
    %v403 = vld [vmem:[#allocation5 + $0x110] sm:$0xff]
    %v404 = vld [vmem:[#allocation5 + $0x118] sm:$0xff]
    %v405 = vld [vmem:[#allocation5 + $0x120] sm:$0xff]
    %v406 = vld [vmem:[#allocation5 + $0x128] sm:$0xff]
    %v407 = vld [vmem:[#allocation5 + $0x130] sm:$0xff]
    %v408 = vld [vmem:[#allocation5 + $0x138] sm:$0xff]
    %v409 = vld [vmem:[#allocation5 + $0x140] sm:$0xff]
    %v410 = vld [vmem:[#allocation5 + $0x148] sm:$0xff]
    %v411 = vld [vmem:[#allocation5 + $0x150] sm:$0xff]
    %v412 = vld [vmem:[#allocation5 + $0x158] sm:$0xff]
    %v413 = vld [vmem:[#allocation5 + $0x160] sm:$0xff]
    %v414 = vld [vmem:[#allocation5 + $0x168] sm:$0xff]
    %v415 = vld [vmem:[#allocation5 + $0x170] sm:$0xff]
    %v416 = vld [vmem:[#allocation5 + $0x178] sm:$0xff]
    %v417 = vld [vmem:[#allocation5 + $0x180] sm:$0xff]
    %v418 = vld [vmem:[#allocation5 + $0x188] sm:$0xff]
    %v419 = vld [vmem:[#allocation5 + $0x190] sm:$0xff]
    %v420 = vld [vmem:[#allocation5 + $0x198] sm:$0xff]
    %v421 = vld [vmem:[#allocation5 + $0x1a0] sm:$0xff]
    %v422 = vld [vmem:[#allocation5 + $0x1a8] sm:$0xff]
    %v423 = vld [vmem:[#allocation5 + $0x1b0] sm:$0xff]
    %v424 = vld [vmem:[#allocation5 + $0x1b8] sm:$0xff]
    %v425 = vld [vmem:[#allocation5 + $0x1c0] sm:$0xff]
    %v426 = vld [vmem:[#allocation5 + $0x1c8] sm:$0xff]
    %v427 = vld [vmem:[#allocation5 + $0x1d0] sm:$0xff]
    %v428 = vld [vmem:[#allocation5 + $0x1d8] sm:$0xff]
    %v429 = vld [vmem:[#allocation5 + $0x1e0] sm:$0xff]
    %v430 = vld [vmem:[#allocation5 + $0x1e8] sm:$0xff]
    %v431 = vld [vmem:[#allocation5 + $0x1f0] sm:$0xff]
    %v432 = vld [vmem:[#allocation5 + $0x1f8] sm:$0xff]
    %v433 = vld [vmem:[#allocation2] sm:$0xff]
    %v434 = vld [vmem:[#allocation3] sm:$0xff]
    %v435 = vld [vmem:[#allocation4] sm:$0xff]
    %v436 = vld [vmem:[#allocation4 + $0x8] sm:$0xff]
    %v437 = vld [vmem:[#allocation4 + $0x10] sm:$0xff]
    %v438 = vld [vmem:[#allocation4 + $0x18] sm:$0xff]
    %439 = vmatprep.subr.mxu0 %v370
    %440 = vmatpush1.msra.mxu0 %v369
    %441 = vmatprep.subr.mxu0 %v374
    %442 = vmatpush1.msra.mxu0 %v373
    %443 = vmatprep.subr.mxu0 %v378
    %444 = vmatpush1.msra.mxu0 %v377
    %445 = vmatprep.subr.mxu0 %v382
    %446 = vmatpush1.msra.mxu0 %v381
    %447 = vmatprep.subr.mxu0 %v386
    %448 = vmatpush1.msra.mxu0 %v385
    %449 = vmatprep.subr.mxu0 %v390
    %450 = vmatpush1.msra.mxu0 %v389
    %451 = vmatprep.subr.mxu0 %v394
    %452 = vmatpush1.msra.mxu0 %v393
    %453 = vmatprep.subr.mxu0 %v398
    %454 = vmatpush1.msra.mxu0 %v397
    %455 = vmatprep.subr.mxu0 %v402
    %456 = vmatpush1.msra.mxu0 %v401
    %457 = vmatprep.subr.mxu0 %v406
    %458 = vmatpush1.msra.mxu0 %v405
    %459 = vmatprep.subr.mxu0 %v410
    %460 = vmatpush1.msra.mxu0 %v409
    %461 = vmatprep.subr.mxu0 %v414
    %462 = vmatpush1.msra.mxu0 %v413
    %463 = vmatprep.subr.mxu0 %v418
    %464 = vmatpush1.msra.mxu0 %v417
    %465 = vmatprep.subr.mxu0 %v422
    %466 = vmatpush1.msra.mxu0 %v421
    %467 = vmatprep.subr.mxu0 %v426
    %468 = vmatpush1.msra.mxu0 %v425
    %469 = vmatprep.subr.mxu0 %v430
    %470 = vmatpush1.msra.mxu0 %v429
    %471 = vmatprep.subr.mxu0 0.0
    %472 = vmatpush1.msra.mxu0 0.0
    %473 = vmatprep.subr.mxu0 0.0
    %474 = vmatpush1.msra.mxu0 0.0
    %475 = vmatprep.subr.mxu0 0.0
    %476 = vmatpush1.msra.mxu0 0.0
    %477 = vmatprep.subr.mxu0 0.0
    %478 = vmatpush1.msra.mxu0 0.0
    %479 = vmatprep.subr.mxu0 0.0
    %480 = vmatpush1.msra.mxu0 0.0
    %481 = vmatprep.subr.mxu0 0.0
    %482 = vmatpush1.msra.mxu0 0.0
    %483 = vmatprep.subr.mxu0 0.0
    %484 = vmatpush1.msra.mxu0 0.0
    %485 = vmatprep.subr.mxu0 0.0
    %486 = vmatpush1.msra.mxu0 0.0
    %487 = vmatprep.subr.mxu0 0.0
    %488 = vmatpush1.msra.mxu0 0.0
    %489 = vmatprep.subr.mxu0 0.0
    %490 = vmatpush1.msra.mxu0 0.0
    %491 = vmatprep.subr.mxu0 0.0
    %492 = vmatpush1.msra.mxu0 0.0
    %493 = vmatprep.subr.mxu0 0.0
    %494 = vmatpush1.msra.mxu0 0.0
    %495 = vmatprep.subr.mxu0 0.0
    %496 = vmatpush1.msra.mxu0 0.0
    %497 = vmatprep.subr.mxu0 0.0
    %498 = vmatpush1.msra.mxu0 0.0
    %499 = vmatprep.subr.mxu0 0.0
    %500 = vmatpush1.msra.mxu0 0.0
    %501 = vmatprep.subr.mxu0 0.0
    %502 = vmatpush1.msra.mxu0 0.0
    %503 = vmatprep.mubr.f32.mxu0 0.0
    %504 = vmatmul.mubr.f32.gmra.mrb[0].mxu0 %v433
    %v505 = vpop.f32.mrb[0].mxu0
    %v506 = vadd.f32 0.0, %v505
    %v507 = vpop.f32.mrb[0].mxu0
    %v508 = vadd.f32 0.0, %v507
    %509 = vdwg.mxu0
    %510 = vmatprep.subr.mxu0 %v372
    %511 = vmatpush1.msra.mxu0 %v371
    %512 = vmatprep.subr.mxu0 %v376
    %513 = vmatpush1.msra.mxu0 %v375
    %514 = vmatprep.subr.mxu0 %v380
    %515 = vmatpush1.msra.mxu0 %v379
    %516 = vmatprep.subr.mxu0 %v384
    %517 = vmatpush1.msra.mxu0 %v383
    %518 = vmatprep.subr.mxu0 %v388
    %519 = vmatpush1.msra.mxu0 %v387
    %520 = vmatprep.subr.mxu0 %v392
    %521 = vmatpush1.msra.mxu0 %v391
    %522 = vmatprep.subr.mxu0 %v396
    %523 = vmatpush1.msra.mxu0 %v395
    %524 = vmatprep.subr.mxu0 %v400
    %525 = vmatpush1.msra.mxu0 %v399
    %526 = vmatprep.subr.mxu0 %v404
    %527 = vmatpush1.msra.mxu0 %v403
    %528 = vmatprep.subr.mxu0 %v408
    %529 = vmatpush1.msra.mxu0 %v407
    %530 = vmatprep.subr.mxu0 %v412
    %531 = vmatpush1.msra.mxu0 %v411
    %532 = vmatprep.subr.mxu0 %v416
    %533 = vmatpush1.msra.mxu0 %v415
    %534 = vmatprep.subr.mxu0 %v420
    %535 = vmatpush1.msra.mxu0 %v419
    %536 = vmatprep.subr.mxu0 %v424
    %537 = vmatpush1.msra.mxu0 %v423
    %538 = vmatprep.subr.mxu0 %v428
    %539 = vmatpush1.msra.mxu0 %v427
    %540 = vmatprep.subr.mxu0 %v432
    %541 = vmatpush1.msra.mxu0 %v431
    %542 = vmatprep.subr.mxu0 0.0
    %543 = vmatpush1.msra.mxu0 0.0
    %544 = vmatprep.subr.mxu0 0.0
    %545 = vmatpush1.msra.mxu0 0.0
    %546 = vmatprep.subr.mxu0 0.0
    %547 = vmatpush1.msra.mxu0 0.0
    %548 = vmatprep.subr.mxu0 0.0
    %549 = vmatpush1.msra.mxu0 0.0
    %550 = vmatprep.subr.mxu0 0.0
    %551 = vmatpush1.msra.mxu0 0.0
    %552 = vmatprep.subr.mxu0 0.0
    %553 = vmatpush1.msra.mxu0 0.0
    %554 = vmatprep.subr.mxu0 0.0
    %555 = vmatpush1.msra.mxu0 0.0
    %556 = vmatprep.subr.mxu0 0.0
    %557 = vmatpush1.msra.mxu0 0.0
    %558 = vmatprep.subr.mxu0 0.0
    %559 = vmatpush1.msra.mxu0 0.0
    %560 = vmatprep.subr.mxu0 0.0
    %561 = vmatpush1.msra.mxu0 0.0
    %562 = vmatprep.subr.mxu0 0.0
    %563 = vmatpush1.msra.mxu0 0.0
    %564 = vmatprep.subr.mxu0 0.0
    %565 = vmatpush1.msra.mxu0 0.0
    %566 = vmatprep.subr.mxu0 0.0
    %567 = vmatpush1.msra.mxu0 0.0
    %568 = vmatprep.subr.mxu0 0.0
    %569 = vmatpush1.msra.mxu0 0.0
    %570 = vmatprep.subr.mxu0 0.0
    %571 = vmatpush1.msra.mxu0 0.0
    %572 = vmatprep.subr.mxu0 0.0
    %573 = vmatpush1.msra.mxu0 0.0
    %574 = vmatprep.mubr.f32.mxu0 0.0
    %575 = vmatmul.mubr.f32.gmra.mrb[0].mxu0 %v433
    %v576 = vpop.f32.mrb[0].mxu0
    %v577 = vadd.f32 0.0, %v576
    %v578 = vpop.f32.mrb[0].mxu0
    %v579 = vadd.f32 0.0, %v578
    %580 = vdwg.mxu0
    %v581 = vadd.f32 %v435, %v506
    %v582 = vadd.f32 %v436, %v508
    %v583 = vadd.f32 %v437, %v577
    %v584 = vadd.f32 %v438, %v579
    %v585 = vxor.u32 %v581, 2147483648
    %v586 = vxor.u32 %v582, 2147483648
    %v587 = vxor.u32 %v583, 2147483648
    %v588 = vmul.f32 %v585, 1.442695
    %v589 = vpow.pop %v588
    %v590 = vmul.f32 %v586, 1.442695
    %v591 = vpow.pop %v590
    %v592 = vmul.f32 %v587, 1.442695
    %v593 = vpow.pop %v592
    %v594 = vadd.f32 %v589, 1.0
    %v595 = vadd.f32 %v591, 1.0
    %v596 = vadd.f32 %v593, 1.0
    %v597 = vrcp.pop %v594
    %v598 = vmul.f32 1.0, %v597
    %v599 = vrcp.pop %v595
    %v600 = vmul.f32 1.0, %v599
    %v601 = vrcp.pop %v596
    %v602 = vmul.f32 1.0, %v601
    %v603 = vtanh.pop %v584
    %v604 = vmul.f32 %v600, %v434
    %v605 = vmul.f32 %v598, %v603
    %v606 = vadd.f32 %v604, %v605
    %v607 = vtanh.pop %v606
    %v608 = vmul.f32 %v602, %v607
    %609 = vst [vmem:[#allocation8] sm:$0xff] %v608
    %s610 = scalar_lea.vmem [#allocation4], 32
    %v611 = vld [vmem:[%s610] sm:$0xff]
    %v612 = vld [vmem:[%s610 + $0x8] sm:$0xff]
    %v613 = vld [vmem:[%s610 + $0x10] sm:$0xff]
    %v614 = vld [vmem:[%s610 + $0x18] sm:$0xff]
    %615 = vmatprep.subr.mxu0 %v370
    %616 = vmatpush1.msra.mxu0 %v369
    %617 = vmatprep.subr.mxu0 %v374
    %618 = vmatpush1.msra.mxu0 %v373
    %619 = vmatprep.subr.mxu0 %v378
    %620 = vmatpush1.msra.mxu0 %v377
    %621 = vmatprep.subr.mxu0 %v382
    %622 = vmatpush1.msra.mxu0 %v381
    %623 = vmatprep.subr.mxu0 %v386
    %624 = vmatpush1.msra.mxu0 %v385
    %625 = vmatprep.subr.mxu0 %v390
    %626 = vmatpush1.msra.mxu0 %v389
    %627 = vmatprep.subr.mxu0 %v394
    %628 = vmatpush1.msra.mxu0 %v393
    %629 = vmatprep.subr.mxu0 %v398
    %630 = vmatpush1.msra.mxu0 %v397
    %631 = vmatprep.subr.mxu0 %v402
    %632 = vmatpush1.msra.mxu0 %v401
    %633 = vmatprep.subr.mxu0 %v406
    %634 = vmatpush1.msra.mxu0 %v405
    %635 = vmatprep.subr.mxu0 %v410
    %636 = vmatpush1.msra.mxu0 %v409
    %637 = vmatprep.subr.mxu0 %v414
    %638 = vmatpush1.msra.mxu0 %v413
    %639 = vmatprep.subr.mxu0 %v418
    %640 = vmatpush1.msra.mxu0 %v417
    %641 = vmatprep.subr.mxu0 %v422
    %642 = vmatpush1.msra.mxu0 %v421
    %643 = vmatprep.subr.mxu0 %v426
    %644 = vmatpush1.msra.mxu0 %v425
    %645 = vmatprep.subr.mxu0 %v430
    %646 = vmatpush1.msra.mxu0 %v429
    %647 = vmatprep.subr.mxu0 0.0
    %648 = vmatpush1.msra.mxu0 0.0
    %649 = vmatprep.subr.mxu0 0.0
    %650 = vmatpush1.msra.mxu0 0.0
    %651 = vmatprep.subr.mxu0 0.0
    %652 = vmatpush1.msra.mxu0 0.0
    %653 = vmatprep.subr.mxu0 0.0
    %654 = vmatpush1.msra.mxu0 0.0
    %655 = vmatprep.subr.mxu0 0.0
    %656 = vmatpush1.msra.mxu0 0.0
    %657 = vmatprep.subr.mxu0 0.0
    %658 = vmatpush1.msra.mxu0 0.0
    %659 = vmatprep.subr.mxu0 0.0
    %660 = vmatpush1.msra.mxu0 0.0
    %661 = vmatprep.subr.mxu0 0.0
    %662 = vmatpush1.msra.mxu0 0.0
    %663 = vmatprep.subr.mxu0 0.0
    %664 = vmatpush1.msra.mxu0 0.0
    %665 = vmatprep.subr.mxu0 0.0
    %666 = vmatpush1.msra.mxu0 0.0
    %667 = vmatprep.subr.mxu0 0.0
    %668 = vmatpush1.msra.mxu0 0.0
    %669 = vmatprep.subr.mxu0 0.0
    %670 = vmatpush1.msra.mxu0 0.0
    %671 = vmatprep.subr.mxu0 0.0
    %672 = vmatpush1.msra.mxu0 0.0
    %673 = vmatprep.subr.mxu0 0.0
    %674 = vmatpush1.msra.mxu0 0.0
    %675 = vmatprep.subr.mxu0 0.0
    %676 = vmatpush1.msra.mxu0 0.0
    %677 = vmatprep.subr.mxu0 0.0
    %678 = vmatpush1.msra.mxu0 0.0
    %679 = vmatprep.mubr.f32.mxu0 0.0
    %680 = vmatmul.mubr.f32.gmra.mrb[0].mxu0 %v608
    %v681 = vpop.f32.mrb[0].mxu0
    %v682 = vadd.f32 0.0, %v681
    %v683 = vpop.f32.mrb[0].mxu0
    %v684 = vadd.f32 0.0, %v683
    %685 = vdwg.mxu0
    %686 = vmatprep.subr.mxu0 %v372
    %687 = vmatpush1.msra.mxu0 %v371
    %688 = vmatprep.subr.mxu0 %v376
    %689 = vmatpush1.msra.mxu0 %v375
    %690 = vmatprep.subr.mxu0 %v380
    %691 = vmatpush1.msra.mxu0 %v379
    %692 = vmatprep.subr.mxu0 %v384
    %693 = vmatpush1.msra.mxu0 %v383
    %694 = vmatprep.subr.mxu0 %v388
    %695 = vmatpush1.msra.mxu0 %v387
    %696 = vmatprep.subr.mxu0 %v392
    %697 = vmatpush1.msra.mxu0 %v391
    %698 = vmatprep.subr.mxu0 %v396
    %699 = vmatpush1.msra.mxu0 %v395
    %700 = vmatprep.subr.mxu0 %v400
    %701 = vmatpush1.msra.mxu0 %v399
    %702 = vmatprep.subr.mxu0 %v404
    %703 = vmatpush1.msra.mxu0 %v403
    %704 = vmatprep.subr.mxu0 %v408
    %705 = vmatpush1.msra.mxu0 %v407
    %706 = vmatprep.subr.mxu0 %v412
    %707 = vmatpush1.msra.mxu0 %v411
    %708 = vmatprep.subr.mxu0 %v416
    %709 = vmatpush1.msra.mxu0 %v415
    %710 = vmatprep.subr.mxu0 %v420
    %711 = vmatpush1.msra.mxu0 %v419
    %712 = vmatprep.subr.mxu0 %v424
    %713 = vmatpush1.msra.mxu0 %v423
    %714 = vmatprep.subr.mxu0 %v428
    %715 = vmatpush1.msra.mxu0 %v427
    %716 = vmatprep.subr.mxu0 %v432
    %717 = vmatpush1.msra.mxu0 %v431
    %718 = vmatprep.subr.mxu0 0.0
    %719 = vmatpush1.msra.mxu0 0.0
    %720 = vmatprep.subr.mxu0 0.0
    %721 = vmatpush1.msra.mxu0 0.0
    %722 = vmatprep.subr.mxu0 0.0
    %723 = vmatpush1.msra.mxu0 0.0
    %724 = vmatprep.subr.mxu0 0.0
    %725 = vmatpush1.msra.mxu0 0.0
    %726 = vmatprep.subr.mxu0 0.0
    %727 = vmatpush1.msra.mxu0 0.0
    %728 = vmatprep.subr.mxu0 0.0
    %729 = vmatpush1.msra.mxu0 0.0
    %730 = vmatprep.subr.mxu0 0.0
    %731 = vmatpush1.msra.mxu0 0.0
    %732 = vmatprep.subr.mxu0 0.0
    %733 = vmatpush1.msra.mxu0 0.0
    %734 = vmatprep.subr.mxu0 0.0
    %735 = vmatpush1.msra.mxu0 0.0
    %736 = vmatprep.subr.mxu0 0.0
    %737 = vmatpush1.msra.mxu0 0.0
    %738 = vmatprep.subr.mxu0 0.0
    %739 = vmatpush1.msra.mxu0 0.0
    %740 = vmatprep.subr.mxu0 0.0
    %741 = vmatpush1.msra.mxu0 0.0
    %742 = vmatprep.subr.mxu0 0.0
    %743 = vmatpush1.msra.mxu0 0.0
    %744 = vmatprep.subr.mxu0 0.0
    %745 = vmatpush1.msra.mxu0 0.0
    %746 = vmatprep.subr.mxu0 0.0
    %747 = vmatpush1.msra.mxu0 0.0
    %748 = vmatprep.subr.mxu0 0.0
    %749 = vmatpush1.msra.mxu0 0.0
    %750 = vmatprep.mubr.f32.mxu0 0.0
    %751 = vmatmul.mubr.f32.gmra.mrb[0].mxu0 %v608
    %v752 = vpop.f32.mrb[0].mxu0
    %v753 = vadd.f32 0.0, %v752
    %v754 = vpop.f32.mrb[0].mxu0
    %v755 = vadd.f32 0.0, %v754
    %756 = vdwg.mxu0
    %v757 = vadd.f32 %v611, %v682
    %v758 = vadd.f32 %v612, %v684
    %v759 = vadd.f32 %v613, %v753
    %v760 = vadd.f32 %v614, %v755
    %v761 = vxor.u32 %v757, 2147483648
    %v762 = vxor.u32 %v758, 2147483648
    %v763 = vxor.u32 %v759, 2147483648
    %v764 = vmul.f32 %v761, 1.442695
    %v765 = vpow.pop %v764
    %v766 = vmul.f32 %v762, 1.442695
    %v767 = vpow.pop %v766
    %v768 = vmul.f32 %v763, 1.442695
    %v769 = vpow.pop %v768
    %v770 = vadd.f32 %v765, 1.0
    %v771 = vadd.f32 %v767, 1.0
    %v772 = vadd.f32 %v769, 1.0
    %v773 = vrcp.pop %v770
    %v774 = vmul.f32 1.0, %v773
    %v775 = vrcp.pop %v771
    %v776 = vmul.f32 1.0, %v775
    %v777 = vrcp.pop %v772
    %v778 = vmul.f32 1.0, %v777
    %v779 = vtanh.pop %v760
    %v780 = vmul.f32 %v776, %v606
    %v781 = vmul.f32 %v774, %v779
    %v782 = vadd.f32 %v780, %v781
    %v783 = vtanh.pop %v782
    %v784 = vmul.f32 %v778, %v783
    %s785 = scalar_lea.vmem [#allocation8], 8
    %786 = vst [vmem:[%s785] sm:$0xff] %v784
    %s787 = scalar_lea.vmem [#allocation4], 64
    %v788 = vld [vmem:[%s787] sm:$0xff]
    %v789 = vld [vmem:[%s787 + $0x8] sm:$0xff]
    %v790 = vld [vmem:[%s787 + $0x10] sm:$0xff]
    %v791 = vld [vmem:[%s787 + $0x18] sm:$0xff]
    %792 = vmatprep.subr.mxu0 %v370
    %793 = vmatpush1.msra.mxu0 %v369
    %794 = vmatprep.subr.mxu0 %v374
    %795 = vmatpush1.msra.mxu0 %v373
    %796 = vmatprep.subr.mxu0 %v378
    %797 = vmatpush1.msra.mxu0 %v377
    %798 = vmatprep.subr.mxu0 %v382
    %799 = vmatpush1.msra.mxu0 %v381
    %800 = vmatprep.subr.mxu0 %v386
    %801 = vmatpush1.msra.mxu0 %v385
    %802 = vmatprep.subr.mxu0 %v390
    %803 = vmatpush1.msra.mxu0 %v389
    %804 = vmatprep.subr.mxu0 %v394
    %805 = vmatpush1.msra.mxu0 %v393
    %806 = vmatprep.subr.mxu0 %v398
    %807 = vmatpush1.msra.mxu0 %v397
    %808 = vmatprep.subr.mxu0 %v402
    %809 = vmatpush1.msra.mxu0 %v401
    %810 = vmatprep.subr.mxu0 %v406
    %811 = vmatpush1.msra.mxu0 %v405
    %812 = vmatprep.subr.mxu0 %v410
    %813 = vmatpush1.msra.mxu0 %v409
    %814 = vmatprep.subr.mxu0 %v414
    %815 = vmatpush1.msra.mxu0 %v413
    %816 = vmatprep.subr.mxu0 %v418
    %817 = vmatpush1.msra.mxu0 %v417
    %818 = vmatprep.subr.mxu0 %v422
    %819 = vmatpush1.msra.mxu0 %v421
    %820 = vmatprep.subr.mxu0 %v426
    %821 = vmatpush1.msra.mxu0 %v425
    %822 = vmatprep.subr.mxu0 %v430
    %823 = vmatpush1.msra.mxu0 %v429
    %824 = vmatprep.subr.mxu0 0.0
    %825 = vmatpush1.msra.mxu0 0.0
    %826 = vmatprep.subr.mxu0 0.0
    %827 = vmatpush1.msra.mxu0 0.0
    %828 = vmatprep.subr.mxu0 0.0
    %829 = vmatpush1.msra.mxu0 0.0
    %830 = vmatprep.subr.mxu0 0.0
    %831 = vmatpush1.msra.mxu0 0.0
    %832 = vmatprep.subr.mxu0 0.0
    %833 = vmatpush1.msra.mxu0 0.0
    %834 = vmatprep.subr.mxu0 0.0
    %835 = vmatpush1.msra.mxu0 0.0
    %836 = vmatprep.subr.mxu0 0.0
    %837 = vmatpush1.msra.mxu0 0.0
    %838 = vmatprep.subr.mxu0 0.0
    %839 = vmatpush1.msra.mxu0 0.0
    %840 = vmatprep.subr.mxu0 0.0
    %841 = vmatpush1.msra.mxu0 0.0
    %842 = vmatprep.subr.mxu0 0.0
    %843 = vmatpush1.msra.mxu0 0.0
    %844 = vmatprep.subr.mxu0 0.0
    %845 = vmatpush1.msra.mxu0 0.0
    %846 = vmatprep.subr.mxu0 0.0
    %847 = vmatpush1.msra.mxu0 0.0
    %848 = vmatprep.subr.mxu0 0.0
    %849 = vmatpush1.msra.mxu0 0.0
    %850 = vmatprep.subr.mxu0 0.0
    %851 = vmatpush1.msra.mxu0 0.0
    %852 = vmatprep.subr.mxu0 0.0
    %853 = vmatpush1.msra.mxu0 0.0
    %854 = vmatprep.subr.mxu0 0.0
    %855 = vmatpush1.msra.mxu0 0.0
    %856 = vmatprep.mubr.f32.mxu0 0.0
    %857 = vmatmul.mubr.f32.gmra.mrb[0].mxu0 %v784
    %v858 = vpop.f32.mrb[0].mxu0
    %v859 = vadd.f32 0.0, %v858
    %v860 = vpop.f32.mrb[0].mxu0
    %v861 = vadd.f32 0.0, %v860
    %862 = vdwg.mxu0
    %863 = vmatprep.subr.mxu0 %v372
    %864 = vmatpush1.msra.mxu0 %v371
    %865 = vmatprep.subr.mxu0 %v376
    %866 = vmatpush1.msra.mxu0 %v375
    %867 = vmatprep.subr.mxu0 %v380
    %868 = vmatpush1.msra.mxu0 %v379
    %869 = vmatprep.subr.mxu0 %v384
    %870 = vmatpush1.msra.mxu0 %v383
    %871 = vmatprep.subr.mxu0 %v388
    %872 = vmatpush1.msra.mxu0 %v387
    %873 = vmatprep.subr.mxu0 %v392
    %874 = vmatpush1.msra.mxu0 %v391
    %875 = vmatprep.subr.mxu0 %v396
    %876 = vmatpush1.msra.mxu0 %v395
    %877 = vmatprep.subr.mxu0 %v400
    %878 = vmatpush1.msra.mxu0 %v399
    %879 = vmatprep.subr.mxu0 %v404
    %880 = vmatpush1.msra.mxu0 %v403
    %881 = vmatprep.subr.mxu0 %v408
    %882 = vmatpush1.msra.mxu0 %v407
    %883 = vmatprep.subr.mxu0 %v412
    %884 = vmatpush1.msra.mxu0 %v411
    %885 = vmatprep.subr.mxu0 %v416
    %886 = vmatpush1.msra.mxu0 %v415
    %887 = vmatprep.subr.mxu0 %v420
    %888 = vmatpush1.msra.mxu0 %v419
    %889 = vmatprep.subr.mxu0 %v424
    %890 = vmatpush1.msra.mxu0 %v423
    %891 = vmatprep.subr.mxu0 %v428
    %892 = vmatpush1.msra.mxu0 %v427
    %893 = vmatprep.subr.mxu0 %v432
    %894 = vmatpush1.msra.mxu0 %v431
    %895 = vmatprep.subr.mxu0 0.0
    %896 = vmatpush1.msra.mxu0 0.0
    %897 = vmatprep.subr.mxu0 0.0
    %898 = vmatpush1.msra.mxu0 0.0
    %899 = vmatprep.subr.mxu0 0.0
    %900 = vmatpush1.msra.mxu0 0.0
    %901 = vmatprep.subr.mxu0 0.0
    %902 = vmatpush1.msra.mxu0 0.0
    %903 = vmatprep.subr.mxu0 0.0
    %904 = vmatpush1.msra.mxu0 0.0
    %905 = vmatprep.subr.mxu0 0.0
    %906 = vmatpush1.msra.mxu0 0.0
    %907 = vmatprep.subr.mxu0 0.0
    %908 = vmatpush1.msra.mxu0 0.0
    %909 = vmatprep.subr.mxu0 0.0
    %910 = vmatpush1.msra.mxu0 0.0
    %911 = vmatprep.subr.mxu0 0.0
    %912 = vmatpush1.msra.mxu0 0.0
    %913 = vmatprep.subr.mxu0 0.0
    %914 = vmatpush1.msra.mxu0 0.0
    %915 = vmatprep.subr.mxu0 0.0
    %916 = vmatpush1.msra.mxu0 0.0
    %917 = vmatprep.subr.mxu0 0.0
    %918 = vmatpush1.msra.mxu0 0.0
    %919 = vmatprep.subr.mxu0 0.0
    %920 = vmatpush1.msra.mxu0 0.0
    %921 = vmatprep.subr.mxu0 0.0
    %922 = vmatpush1.msra.mxu0 0.0
    %923 = vmatprep.subr.mxu0 0.0
    %924 = vmatpush1.msra.mxu0 0.0
    %925 = vmatprep.subr.mxu0 0.0
    %926 = vmatpush1.msra.mxu0 0.0
    %927 = vmatprep.mubr.f32.mxu0 0.0
    %928 = vmatmul.mubr.f32.gmra.mrb[0].mxu0 %v784
    %v929 = vpop.f32.mrb[0].mxu0
    %v930 = vadd.f32 0.0, %v929
    %v931 = vpop.f32.mrb[0].mxu0
    %v932 = vadd.f32 0.0, %v931
    %933 = vdwg.mxu0
    %v934 = vadd.f32 %v788, %v859
    %v935 = vadd.f32 %v789, %v861
    %v936 = vadd.f32 %v790, %v930
    %v937 = vadd.f32 %v791, %v932
    %v938 = vxor.u32 %v934, 2147483648
    %v939 = vxor.u32 %v935, 2147483648
    %v940 = vxor.u32 %v936, 2147483648
    %v941 = vmul.f32 %v938, 1.442695
    %v942 = vpow.pop %v941
    %v943 = vmul.f32 %v939, 1.442695
    %v944 = vpow.pop %v943
    %v945 = vmul.f32 %v940, 1.442695
    %v946 = vpow.pop %v945
    %v947 = vadd.f32 %v942, 1.0
    %v948 = vadd.f32 %v944, 1.0
    %v949 = vadd.f32 %v946, 1.0
    %v950 = vrcp.pop %v947
    %v951 = vmul.f32 1.0, %v950
    %v952 = vrcp.pop %v948
    %v953 = vmul.f32 1.0, %v952
    %v954 = vrcp.pop %v949
    %v955 = vmul.f32 1.0, %v954
    %v956 = vtanh.pop %v937
    %v957 = vmul.f32 %v953, %v782
    %v958 = vmul.f32 %v951, %v956
    %v959 = vadd.f32 %v957, %v958
    %v960 = vtanh.pop %v959
    %v961 = vmul.f32 %v955, %v960
    %s962 = scalar_lea.vmem [#allocation8], 16
    %963 = vst [vmem:[%s962] sm:$0xff] %v961
    %s964 = scalar_lea.vmem [#allocation4], 96
    %v965 = vld [vmem:[%s964] sm:$0xff]
    %v966 = vld [vmem:[%s964 + $0x8] sm:$0xff]
    %v967 = vld [vmem:[%s964 + $0x10] sm:$0xff]
    %v968 = vld [vmem:[%s964 + $0x18] sm:$0xff]
    %969 = vmatprep.subr.mxu0 %v370
    %970 = vmatpush1.msra.mxu0 %v369
    %971 = vmatprep.subr.mxu0 %v374
    %972 = vmatpush1.msra.mxu0 %v373
    %973 = vmatprep.subr.mxu0 %v378
    %974 = vmatpush1.msra.mxu0 %v377
    %975 = vmatprep.subr.mxu0 %v382
    %976 = vmatpush1.msra.mxu0 %v381
    %977 = vmatprep.subr.mxu0 %v386
    %978 = vmatpush1.msra.mxu0 %v385
    %979 = vmatprep.subr.mxu0 %v390
    %980 = vmatpush1.msra.mxu0 %v389
    %981 = vmatprep.subr.mxu0 %v394
    %982 = vmatpush1.msra.mxu0 %v393
    %983 = vmatprep.subr.mxu0 %v398
    %984 = vmatpush1.msra.mxu0 %v397
    %985 = vmatprep.subr.mxu0 %v402
    %986 = vmatpush1.msra.mxu0 %v401
    %987 = vmatprep.subr.mxu0 %v406
    %988 = vmatpush1.msra.mxu0 %v405
    %989 = vmatprep.subr.mxu0 %v410
    %990 = vmatpush1.msra.mxu0 %v409
    %991 = vmatprep.subr.mxu0 %v414
    %992 = vmatpush1.msra.mxu0 %v413
    %993 = vmatprep.subr.mxu0 %v418
    %994 = vmatpush1.msra.mxu0 %v417
    %995 = vmatprep.subr.mxu0 %v422
    %996 = vmatpush1.msra.mxu0 %v421
    %997 = vmatprep.subr.mxu0 %v426
    %998 = vmatpush1.msra.mxu0 %v425
    %999 = vmatprep.subr.mxu0 %v430
    %1000 = vmatpush1.msra.mxu0 %v429
    %1001 = vmatprep.subr.mxu0 0.0
    %1002 = vmatpush1.msra.mxu0 0.0
    %1003 = vmatprep.subr.mxu0 0.0
    %1004 = vmatpush1.msra.mxu0 0.0
    %1005 = vmatprep.subr.mxu0 0.0
    %1006 = vmatpush1.msra.mxu0 0.0
    %1007 = vmatprep.subr.mxu0 0.0
    %1008 = vmatpush1.msra.mxu0 0.0
    %1009 = vmatprep.subr.mxu0 0.0
    %1010 = vmatpush1.msra.mxu0 0.0
    %1011 = vmatprep.subr.mxu0 0.0
    %1012 = vmatpush1.msra.mxu0 0.0
    %1013 = vmatprep.subr.mxu0 0.0
    %1014 = vmatpush1.msra.mxu0 0.0
    %1015 = vmatprep.subr.mxu0 0.0
    %1016 = vmatpush1.msra.mxu0 0.0
    %1017 = vmatprep.subr.mxu0 0.0
    %1018 = vmatpush1.msra.mxu0 0.0
    %1019 = vmatprep.subr.mxu0 0.0
    %1020 = vmatpush1.msra.mxu0 0.0
    %1021 = vmatprep.subr.mxu0 0.0
    %1022 = vmatpush1.msra.mxu0 0.0
    %1023 = vmatprep.subr.mxu0 0.0
    %1024 = vmatpush1.msra.mxu0 0.0
    %1025 = vmatprep.subr.mxu0 0.0
    %1026 = vmatpush1.msra.mxu0 0.0
    %1027 = vmatprep.subr.mxu0 0.0
    %1028 = vmatpush1.msra.mxu0 0.0
    %1029 = vmatprep.subr.mxu0 0.0
    %1030 = vmatpush1.msra.mxu0 0.0
    %1031 = vmatprep.subr.mxu0 0.0
    %1032 = vmatpush1.msra.mxu0 0.0
    %1033 = vmatprep.mubr.f32.mxu0 0.0
    %1034 = vmatmul.mubr.f32.gmra.mrb[0].mxu0 %v961
    %v1035 = vpop.f32.mrb[0].mxu0
    %v1036 = vadd.f32 0.0, %v1035
    %v1037 = vpop.f32.mrb[0].mxu0
    %v1038 = vadd.f32 0.0, %v1037
    %1039 = vdwg.mxu0
    %1040 = vmatprep.subr.mxu0 %v372
    %1041 = vmatpush1.msra.mxu0 %v371
    %1042 = vmatprep.subr.mxu0 %v376
    %1043 = vmatpush1.msra.mxu0 %v375
    %1044 = vmatprep.subr.mxu0 %v380
    %1045 = vmatpush1.msra.mxu0 %v379
    %1046 = vmatprep.subr.mxu0 %v384
    %1047 = vmatpush1.msra.mxu0 %v383
    %1048 = vmatprep.subr.mxu0 %v388
    %1049 = vmatpush1.msra.mxu0 %v387
    %1050 = vmatprep.subr.mxu0 %v392
    %1051 = vmatpush1.msra.mxu0 %v391
    %1052 = vmatprep.subr.mxu0 %v396
    %1053 = vmatpush1.msra.mxu0 %v395
    %1054 = vmatprep.subr.mxu0 %v400
    %1055 = vmatpush1.msra.mxu0 %v399
    %1056 = vmatprep.subr.mxu0 %v404
    %1057 = vmatpush1.msra.mxu0 %v403
    %1058 = vmatprep.subr.mxu0 %v408
    %1059 = vmatpush1.msra.mxu0 %v407
    %1060 = vmatprep.subr.mxu0 %v412
    %1061 = vmatpush1.msra.mxu0 %v411
    %1062 = vmatprep.subr.mxu0 %v416
    %1063 = vmatpush1.msra.mxu0 %v415
    %1064 = vmatprep.subr.mxu0 %v420
    %1065 = vmatpush1.msra.mxu0 %v419
    %1066 = vmatprep.subr.mxu0 %v424
    %1067 = vmatpush1.msra.mxu0 %v423
    %1068 = vmatprep.subr.mxu0 %v428
    %1069 = vmatpush1.msra.mxu0 %v427
    %1070 = vmatprep.subr.mxu0 %v432
    %1071 = vmatpush1.msra.mxu0 %v431
    %1072 = vmatprep.subr.mxu0 0.0
    %1073 = vmatpush1.msra.mxu0 0.0
    %1074 = vmatprep.subr.mxu0 0.0
    %1075 = vmatpush1.msra.mxu0 0.0
    %1076 = vmatprep.subr.mxu0 0.0
    %1077 = vmatpush1.msra.mxu0 0.0
    %1078 = vmatprep.subr.mxu0 0.0
    %1079 = vmatpush1.msra.mxu0 0.0
    %1080 = vmatprep.subr.mxu0 0.0
    %1081 = vmatpush1.msra.mxu0 0.0
    %1082 = vmatprep.subr.mxu0 0.0
    %1083 = vmatpush1.msra.mxu0 0.0
    %1084 = vmatprep.subr.mxu0 0.0
    %1085 = vmatpush1.msra.mxu0 0.0
    %1086 = vmatprep.subr.mxu0 0.0
    %1087 = vmatpush1.msra.mxu0 0.0
    %1088 = vmatprep.subr.mxu0 0.0
    %1089 = vmatpush1.msra.mxu0 0.0
    %1090 = vmatprep.subr.mxu0 0.0
    %1091 = vmatpush1.msra.mxu0 0.0
    %1092 = vmatprep.subr.mxu0 0.0
    %1093 = vmatpush1.msra.mxu0 0.0
    %1094 = vmatprep.subr.mxu0 0.0
    %1095 = vmatpush1.msra.mxu0 0.0
    %1096 = vmatprep.subr.mxu0 0.0
    %1097 = vmatpush1.msra.mxu0 0.0
    %1098 = vmatprep.subr.mxu0 0.0
    %1099 = vmatpush1.msra.mxu0 0.0
    %1100 = vmatprep.subr.mxu0 0.0
    %1101 = vmatpush1.msra.mxu0 0.0
    %1102 = vmatprep.subr.mxu0 0.0
    %1103 = vmatpush1.msra.mxu0 0.0
    %1104 = vmatprep.mubr.f32.mxu0 0.0
    %1105 = vmatmul.mubr.f32.gmra.mrb[0].mxu0 %v961
    %v1106 = vpop.f32.mrb[0].mxu0
    %v1107 = vadd.f32 0.0, %v1106
    %v1108 = vpop.f32.mrb[0].mxu0
    %v1109 = vadd.f32 0.0, %v1108
    %1110 = vdwg.mxu0
    %v1111 = vadd.f32 %v965, %v1036
    %v1112 = vadd.f32 %v966, %v1038
    %v1113 = vadd.f32 %v967, %v1107
    %v1114 = vadd.f32 %v968, %v1109
    %v1115 = vxor.u32 %v1111, 2147483648
    %v1116 = vxor.u32 %v1112, 2147483648
    %v1117 = vxor.u32 %v1113, 2147483648
    %v1118 = vmul.f32 %v1115, 1.442695
    %v1119 = vpow.pop %v1118
    %v1120 = vmul.f32 %v1116, 1.442695
    %v1121 = vpow.pop %v1120
    %v1122 = vmul.f32 %v1117, 1.442695
    %v1123 = vpow.pop %v1122
    %v1124 = vadd.f32 %v1119, 1.0
    %v1125 = vadd.f32 %v1121, 1.0
    %v1126 = vadd.f32 %v1123, 1.0
    %v1127 = vrcp.pop %v1124
    %v1128 = vmul.f32 1.0, %v1127
    %v1129 = vrcp.pop %v1125
    %v1130 = vmul.f32 1.0, %v1129
    %v1131 = vrcp.pop %v1126
    %v1132 = vmul.f32 1.0, %v1131
    %v1133 = vtanh.pop %v1114
    %v1134 = vmul.f32 %v1130, %v959
    %v1135 = vmul.f32 %v1128, %v1133
    %v1136 = vadd.f32 %v1134, %v1135
    %v1137 = vtanh.pop %v1136
    %v1138 = vmul.f32 %v1132, %v1137
    %s1139 = scalar_lea.vmem [#allocation8], 24
    %1140 = vst [vmem:[%s1139] sm:$0xff] %v1138
    %s1141 = scalar_lea.vmem [#allocation4], 128
    %v1142 = vld [vmem:[%s1141] sm:$0xff]
    %v1143 = vld [vmem:[%s1141 + $0x8] sm:$0xff]
    %v1144 = vld [vmem:[%s1141 + $0x10] sm:$0xff]
    %v1145 = vld [vmem:[%s1141 + $0x18] sm:$0xff]
    %1146 = vmatprep.subr.mxu0 %v370
    %1147 = vmatpush1.msra.mxu0 %v369
    %1148 = vmatprep.subr.mxu0 %v374
    %1149 = vmatpush1.msra.mxu0 %v373
    %1150 = vmatprep.subr.mxu0 %v378
    %1151 = vmatpush1.msra.mxu0 %v377
    %1152 = vmatprep.subr.mxu0 %v382
    %1153 = vmatpush1.msra.mxu0 %v381
    %1154 = vmatprep.subr.mxu0 %v386
    %1155 = vmatpush1.msra.mxu0 %v385
    %1156 = vmatprep.subr.mxu0 %v390
    %1157 = vmatpush1.msra.mxu0 %v389
    %1158 = vmatprep.subr.mxu0 %v394
    %1159 = vmatpush1.msra.mxu0 %v393
    %1160 = vmatprep.subr.mxu0 %v398
    %1161 = vmatpush1.msra.mxu0 %v397
    %1162 = vmatprep.subr.mxu0 %v402
    %1163 = vmatpush1.msra.mxu0 %v401
    %1164 = vmatprep.subr.mxu0 %v406
    %1165 = vmatpush1.msra.mxu0 %v405
    %1166 = vmatprep.subr.mxu0 %v410
    %1167 = vmatpush1.msra.mxu0 %v409
    %1168 = vmatprep.subr.mxu0 %v414
    %1169 = vmatpush1.msra.mxu0 %v413
    %1170 = vmatprep.subr.mxu0 %v418
    %1171 = vmatpush1.msra.mxu0 %v417
    %1172 = vmatprep.subr.mxu0 %v422
    %1173 = vmatpush1.msra.mxu0 %v421
    %1174 = vmatprep.subr.mxu0 %v426
    %1175 = vmatpush1.msra.mxu0 %v425
    %1176 = vmatprep.subr.mxu0 %v430
    %1177 = vmatpush1.msra.mxu0 %v429
    %1178 = vmatprep.subr.mxu0 0.0
    %1179 = vmatpush1.msra.mxu0 0.0
    %1180 = vmatprep.subr.mxu0 0.0
    %1181 = vmatpush1.msra.mxu0 0.0
    %1182 = vmatprep.subr.mxu0 0.0
    %1183 = vmatpush1.msra.mxu0 0.0
    %1184 = vmatprep.subr.mxu0 0.0
    %1185 = vmatpush1.msra.mxu0 0.0
    %1186 = vmatprep.subr.mxu0 0.0
    %1187 = vmatpush1.msra.mxu0 0.0
    %1188 = vmatprep.subr.mxu0 0.0
    %1189 = vmatpush1.msra.mxu0 0.0
    %1190 = vmatprep.subr.mxu0 0.0
    %1191 = vmatpush1.msra.mxu0 0.0
    %1192 = vmatprep.subr.mxu0 0.0
    %1193 = vmatpush1.msra.mxu0 0.0
    %1194 = vmatprep.subr.mxu0 0.0
    %1195 = vmatpush1.msra.mxu0 0.0
    %1196 = vmatprep.subr.mxu0 0.0
    %1197 = vmatpush1.msra.mxu0 0.0
    %1198 = vmatprep.subr.mxu0 0.0
    %1199 = vmatpush1.msra.mxu0 0.0
    %1200 = vmatprep.subr.mxu0 0.0
    %1201 = vmatpush1.msra.mxu0 0.0
    %1202 = vmatprep.subr.mxu0 0.0
    %1203 = vmatpush1.msra.mxu0 0.0
    %1204 = vmatprep.subr.mxu0 0.0
    %1205 = vmatpush1.msra.mxu0 0.0
    %1206 = vmatprep.subr.mxu0 0.0
    %1207 = vmatpush1.msra.mxu0 0.0
    %1208 = vmatprep.subr.mxu0 0.0
    %1209 = vmatpush1.msra.mxu0 0.0
    %1210 = vmatprep.mubr.f32.mxu0 0.0
    %1211 = vmatmul.mubr.f32.gmra.mrb[0].mxu0 %v1138
    %v1212 = vpop.f32.mrb[0].mxu0
    %v1213 = vadd.f32 0.0, %v1212
    %v1214 = vpop.f32.mrb[0].mxu0
    %v1215 = vadd.f32 0.0, %v1214
    %1216 = vdwg.mxu0
    %1217 = vmatprep.subr.mxu0 %v372
    %1218 = vmatpush1.msra.mxu0 %v371
    %1219 = vmatprep.subr.mxu0 %v376
    %1220 = vmatpush1.msra.mxu0 %v375
    %1221 = vmatprep.subr.mxu0 %v380
    %1222 = vmatpush1.msra.mxu0 %v379
    %1223 = vmatprep.subr.mxu0 %v384
    %1224 = vmatpush1.msra.mxu0 %v383
    %1225 = vmatprep.subr.mxu0 %v388
    %1226 = vmatpush1.msra.mxu0 %v387
    %1227 = vmatprep.subr.mxu0 %v392
    %1228 = vmatpush1.msra.mxu0 %v391
    %1229 = vmatprep.subr.mxu0 %v396
    %1230 = vmatpush1.msra.mxu0 %v395
    %1231 = vmatprep.subr.mxu0 %v400
    %1232 = vmatpush1.msra.mxu0 %v399
    %1233 = vmatprep.subr.mxu0 %v404
    %1234 = vmatpush1.msra.mxu0 %v403
    %1235 = vmatprep.subr.mxu0 %v408
    %1236 = vmatpush1.msra.mxu0 %v407
    %1237 = vmatprep.subr.mxu0 %v412
    %1238 = vmatpush1.msra.mxu0 %v411
    %1239 = vmatprep.subr.mxu0 %v416
    %1240 = vmatpush1.msra.mxu0 %v415
    %1241 = vmatprep.subr.mxu0 %v420
    %1242 = vmatpush1.msra.mxu0 %v419
    %1243 = vmatprep.subr.mxu0 %v424
    %1244 = vmatpush1.msra.mxu0 %v423
    %1245 = vmatprep.subr.mxu0 %v428
    %1246 = vmatpush1.msra.mxu0 %v427
    %1247 = vmatprep.subr.mxu0 %v432
    %1248 = vmatpush1.msra.mxu0 %v431
    %1249 = vmatprep.subr.mxu0 0.0
    %1250 = vmatpush1.msra.mxu0 0.0
    %1251 = vmatprep.subr.mxu0 0.0
    %1252 = vmatpush1.msra.mxu0 0.0
    %1253 = vmatprep.subr.mxu0 0.0
    %1254 = vmatpush1.msra.mxu0 0.0
    %1255 = vmatprep.subr.mxu0 0.0
    %1256 = vmatpush1.msra.mxu0 0.0
    %1257 = vmatprep.subr.mxu0 0.0
    %1258 = vmatpush1.msra.mxu0 0.0
    %1259 = vmatprep.subr.mxu0 0.0
    %1260 = vmatpush1.msra.mxu0 0.0
    %1261 = vmatprep.subr.mxu0 0.0
    %1262 = vmatpush1.msra.mxu0 0.0
    %1263 = vmatprep.subr.mxu0 0.0
    %1264 = vmatpush1.msra.mxu0 0.0
    %1265 = vmatprep.subr.mxu0 0.0
    %1266 = vmatpush1.msra.mxu0 0.0
    %1267 = vmatprep.subr.mxu0 0.0
    %1268 = vmatpush1.msra.mxu0 0.0
    %1269 = vmatprep.subr.mxu0 0.0
    %1270 = vmatpush1.msra.mxu0 0.0
    %1271 = vmatprep.subr.mxu0 0.0
    %1272 = vmatpush1.msra.mxu0 0.0
    %1273 = vmatprep.subr.mxu0 0.0
    %1274 = vmatpush1.msra.mxu0 0.0
    %1275 = vmatprep.subr.mxu0 0.0
    %1276 = vmatpush1.msra.mxu0 0.0
    %1277 = vmatprep.subr.mxu0 0.0
    %1278 = vmatpush1.msra.mxu0 0.0
    %1279 = vmatprep.subr.mxu0 0.0
    %1280 = vmatpush1.msra.mxu0 0.0
    %1281 = vmatprep.mubr.f32.mxu0 0.0
    %1282 = vmatmul.mubr.f32.gmra.mrb[0].mxu0 %v1138
    %v1283 = vpop.f32.mrb[0].mxu0
    %v1284 = vadd.f32 0.0, %v1283
    %v1285 = vpop.f32.mrb[0].mxu0
    %v1286 = vadd.f32 0.0, %v1285
    %1287 = vdwg.mxu0
    %v1288 = vadd.f32 %v1142, %v1213
    %v1289 = vadd.f32 %v1143, %v1215
    %v1290 = vadd.f32 %v1144, %v1284
    %v1291 = vadd.f32 %v1145, %v1286
    %v1292 = vxor.u32 %v1288, 2147483648
    %v1293 = vxor.u32 %v1289, 2147483648
    %v1294 = vxor.u32 %v1290, 2147483648
    %v1295 = vmul.f32 %v1292, 1.442695
    %v1296 = vpow.pop %v1295
    %v1297 = vmul.f32 %v1293, 1.442695
    %v1298 = vpow.pop %v1297
    %v1299 = vmul.f32 %v1294, 1.442695
    %v1300 = vpow.pop %v1299
    %v1301 = vadd.f32 %v1296, 1.0
    %v1302 = vadd.f32 %v1298, 1.0
    %v1303 = vadd.f32 %v1300, 1.0
    %v1304 = vrcp.pop %v1301
    %v1305 = vmul.f32 1.0, %v1304
    %v1306 = vrcp.pop %v1302
    %v1307 = vmul.f32 1.0, %v1306
    %v1308 = vrcp.pop %v1303
    %v1309 = vmul.f32 1.0, %v1308
    %v1310 = vtanh.pop %v1291
    %v1311 = vmul.f32 %v1307, %v1136
    %v1312 = vmul.f32 %v1305, %v1310
    %v1313 = vadd.f32 %v1311, %v1312
    %v1314 = vtanh.pop %v1313
    %v1315 = vmul.f32 %v1309, %v1314
    %s1316 = scalar_lea.vmem [#allocation8], 32
    %1317 = vst [vmem:[%s1316] sm:$0xff] %v1315
    %s1318 = scalar_lea.vmem [#allocation4], 160
    %v1319 = vld [vmem:[%s1318] sm:$0xff]
    %v1320 = vld [vmem:[%s1318 + $0x8] sm:$0xff]
    %v1321 = vld [vmem:[%s1318 + $0x10] sm:$0xff]
    %v1322 = vld [vmem:[%s1318 + $0x18] sm:$0xff]
    %1323 = vmatprep.subr.mxu0 %v370
    %1324 = vmatpush1.msra.mxu0 %v369
    %1325 = vmatprep.subr.mxu0 %v374
    %1326 = vmatpush1.msra.mxu0 %v373
    %1327 = vmatprep.subr.mxu0 %v378
    %1328 = vmatpush1.msra.mxu0 %v377
    %1329 = vmatprep.subr.mxu0 %v382
    %1330 = vmatpush1.msra.mxu0 %v381
    %1331 = vmatprep.subr.mxu0 %v386
    %1332 = vmatpush1.msra.mxu0 %v385
    %1333 = vmatprep.subr.mxu0 %v390
    %1334 = vmatpush1.msra.mxu0 %v389
    %1335 = vmatprep.subr.mxu0 %v394
    %1336 = vmatpush1.msra.mxu0 %v393
    %1337 = vmatprep.subr.mxu0 %v398
    %1338 = vmatpush1.msra.mxu0 %v397
    %1339 = vmatprep.subr.mxu0 %v402
    %1340 = vmatpush1.msra.mxu0 %v401
    %1341 = vmatprep.subr.mxu0 %v406
    %1342 = vmatpush1.msra.mxu0 %v405
    %1343 = vmatprep.subr.mxu0 %v410
    %1344 = vmatpush1.msra.mxu0 %v409
    %1345 = vmatprep.subr.mxu0 %v414
    %1346 = vmatpush1.msra.mxu0 %v413
    %1347 = vmatprep.subr.mxu0 %v418
    %1348 = vmatpush1.msra.mxu0 %v417
    %1349 = vmatprep.subr.mxu0 %v422
    %1350 = vmatpush1.msra.mxu0 %v421
    %1351 = vmatprep.subr.mxu0 %v426
    %1352 = vmatpush1.msra.mxu0 %v425
    %1353 = vmatprep.subr.mxu0 %v430
    %1354 = vmatpush1.msra.mxu0 %v429
    %1355 = vmatprep.subr.mxu0 0.0
    %1356 = vmatpush1.msra.mxu0 0.0
    %1357 = vmatprep.subr.mxu0 0.0
    %1358 = vmatpush1.msra.mxu0 0.0
    %1359 = vmatprep.subr.mxu0 0.0
    %1360 = vmatpush1.msra.mxu0 0.0
    %1361 = vmatprep.subr.mxu0 0.0
    %1362 = vmatpush1.msra.mxu0 0.0
    %1363 = vmatprep.subr.mxu0 0.0
    %1364 = vmatpush1.msra.mxu0 0.0
    %1365 = vmatprep.subr.mxu0 0.0
    %1366 = vmatpush1.msra.mxu0 0.0
    %1367 = vmatprep.subr.mxu0 0.0
    %1368 = vmatpush1.msra.mxu0 0.0
    %1369 = vmatprep.subr.mxu0 0.0
    %1370 = vmatpush1.msra.mxu0 0.0
    %1371 = vmatprep.subr.mxu0 0.0
    %1372 = vmatpush1.msra.mxu0 0.0
    %1373 = vmatprep.subr.mxu0 0.0
    %1374 = vmatpush1.msra.mxu0 0.0
    %1375 = vmatprep.subr.mxu0 0.0
    %1376 = vmatpush1.msra.mxu0 0.0
    %1377 = vmatprep.subr.mxu0 0.0
    %1378 = vmatpush1.msra.mxu0 0.0
    %1379 = vmatprep.subr.mxu0 0.0
    %1380 = vmatpush1.msra.mxu0 0.0
    %1381 = vmatprep.subr.mxu0 0.0
    %1382 = vmatpush1.msra.mxu0 0.0
    %1383 = vmatprep.subr.mxu0 0.0
    %1384 = vmatpush1.msra.mxu0 0.0
    %1385 = vmatprep.subr.mxu0 0.0
    %1386 = vmatpush1.msra.mxu0 0.0
    %1387 = vmatprep.mubr.f32.mxu0 0.0
    %1388 = vmatmul.mubr.f32.gmra.mrb[0].mxu0 %v1315
    %v1389 = vpop.f32.mrb[0].mxu0
    %v1390 = vadd.f32 0.0, %v1389
    %v1391 = vpop.f32.mrb[0].mxu0
    %v1392 = vadd.f32 0.0, %v1391
    %1393 = vdwg.mxu0
    %1394 = vmatprep.subr.mxu0 %v372
    %1395 = vmatpush1.msra.mxu0 %v371
    %1396 = vmatprep.subr.mxu0 %v376
    %1397 = vmatpush1.msra.mxu0 %v375
    %1398 = vmatprep.subr.mxu0 %v380
    %1399 = vmatpush1.msra.mxu0 %v379
    %1400 = vmatprep.subr.mxu0 %v384
    %1401 = vmatpush1.msra.mxu0 %v383
    %1402 = vmatprep.subr.mxu0 %v388
    %1403 = vmatpush1.msra.mxu0 %v387
    %1404 = vmatprep.subr.mxu0 %v392
    %1405 = vmatpush1.msra.mxu0 %v391
    %1406 = vmatprep.subr.mxu0 %v396
    %1407 = vmatpush1.msra.mxu0 %v395
    %1408 = vmatprep.subr.mxu0 %v400
    %1409 = vmatpush1.msra.mxu0 %v399
    %1410 = vmatprep.subr.mxu0 %v404
    %1411 = vmatpush1.msra.mxu0 %v403
    %1412 = vmatprep.subr.mxu0 %v408
    %1413 = vmatpush1.msra.mxu0 %v407
    %1414 = vmatprep.subr.mxu0 %v412
    %1415 = vmatpush1.msra.mxu0 %v411
    %1416 = vmatprep.subr.mxu0 %v416
    %1417 = vmatpush1.msra.mxu0 %v415
    %1418 = vmatprep.subr.mxu0 %v420
    %1419 = vmatpush1.msra.mxu0 %v419
    %1420 = vmatprep.subr.mxu0 %v424
    %1421 = vmatpush1.msra.mxu0 %v423
    %1422 = vmatprep.subr.mxu0 %v428
    %1423 = vmatpush1.msra.mxu0 %v427
    %1424 = vmatprep.subr.mxu0 %v432
    %1425 = vmatpush1.msra.mxu0 %v431
    %1426 = vmatprep.subr.mxu0 0.0
    %1427 = vmatpush1.msra.mxu0 0.0
    %1428 = vmatprep.subr.mxu0 0.0
    %1429 = vmatpush1.msra.mxu0 0.0
    %1430 = vmatprep.subr.mxu0 0.0
    %1431 = vmatpush1.msra.mxu0 0.0
    %1432 = vmatprep.subr.mxu0 0.0
    %1433 = vmatpush1.msra.mxu0 0.0
    %1434 = vmatprep.subr.mxu0 0.0
    %1435 = vmatpush1.msra.mxu0 0.0
    %1436 = vmatprep.subr.mxu0 0.0
    %1437 = vmatpush1.msra.mxu0 0.0
    %1438 = vmatprep.subr.mxu0 0.0
    %1439 = vmatpush1.msra.mxu0 0.0
    %1440 = vmatprep.subr.mxu0 0.0
    %1441 = vmatpush1.msra.mxu0 0.0
    %1442 = vmatprep.subr.mxu0 0.0
    %1443 = vmatpush1.msra.mxu0 0.0
    %1444 = vmatprep.subr.mxu0 0.0
    %1445 = vmatpush1.msra.mxu0 0.0
    %1446 = vmatprep.subr.mxu0 0.0
    %1447 = vmatpush1.msra.mxu0 0.0
    %1448 = vmatprep.subr.mxu0 0.0
    %1449 = vmatpush1.msra.mxu0 0.0
    %1450 = vmatprep.subr.mxu0 0.0
    %1451 = vmatpush1.msra.mxu0 0.0
    %1452 = vmatprep.subr.mxu0 0.0
    %1453 = vmatpush1.msra.mxu0 0.0
    %1454 = vmatprep.subr.mxu0 0.0
    %1455 = vmatpush1.msra.mxu0 0.0
    %1456 = vmatprep.subr.mxu0 0.0
    %1457 = vmatpush1.msra.mxu0 0.0
    %1458 = vmatprep.mubr.f32.mxu0 0.0
    %1459 = vmatmul.mubr.f32.gmra.mrb[0].mxu0 %v1315
    %v1460 = vpop.f32.mrb[0].mxu0
    %v1461 = vadd.f32 0.0, %v1460
    %v1462 = vpop.f32.mrb[0].mxu0
    %v1463 = vadd.f32 0.0, %v1462
    %1464 = vdwg.mxu0
    %v1465 = vadd.f32 %v1319, %v1390
    %v1466 = vadd.f32 %v1320, %v1392
    %v1467 = vadd.f32 %v1321, %v1461
    %v1468 = vadd.f32 %v1322, %v1463
    %v1469 = vxor.u32 %v1465, 2147483648
    %v1470 = vxor.u32 %v1466, 2147483648
    %v1471 = vxor.u32 %v1467, 2147483648
    %v1472 = vmul.f32 %v1469, 1.442695
    %v1473 = vpow.pop %v1472
    %v1474 = vmul.f32 %v1470, 1.442695
    %v1475 = vpow.pop %v1474
    %v1476 = vmul.f32 %v1471, 1.442695
    %v1477 = vpow.pop %v1476
    %v1478 = vadd.f32 %v1473, 1.0
    %v1479 = vadd.f32 %v1475, 1.0
    %v1480 = vadd.f32 %v1477, 1.0
    %v1481 = vrcp.pop %v1478
    %v1482 = vmul.f32 1.0, %v1481
    %v1483 = vrcp.pop %v1479
    %v1484 = vmul.f32 1.0, %v1483
    %v1485 = vrcp.pop %v1480
    %v1486 = vmul.f32 1.0, %v1485
    %v1487 = vtanh.pop %v1468
    %v1488 = vmul.f32 %v1484, %v1313
    %v1489 = vmul.f32 %v1482, %v1487
    %v1490 = vadd.f32 %v1488, %v1489
    %v1491 = vtanh.pop %v1490
    %v1492 = vmul.f32 %v1486, %v1491
    %s1493 = scalar_lea.vmem [#allocation8], 40
    %1494 = vst [vmem:[%s1493] sm:$0xff] %v1492
    %s1495 = scalar_lea.vmem [#allocation4], 192
    %v1496 = vld [vmem:[%s1495] sm:$0xff]
    %v1497 = vld [vmem:[%s1495 + $0x8] sm:$0xff]
    %v1498 = vld [vmem:[%s1495 + $0x10] sm:$0xff]
    %v1499 = vld [vmem:[%s1495 + $0x18] sm:$0xff]
    %1500 = vmatprep.subr.mxu0 %v370
    %1501 = vmatpush1.msra.mxu0 %v369
    %1502 = vmatprep.subr.mxu0 %v374
    %1503 = vmatpush1.msra.mxu0 %v373
    %1504 = vmatprep.subr.mxu0 %v378
    %1505 = vmatpush1.msra.mxu0 %v377
    %1506 = vmatprep.subr.mxu0 %v382
    %1507 = vmatpush1.msra.mxu0 %v381
    %1508 = vmatprep.subr.mxu0 %v386
    %1509 = vmatpush1.msra.mxu0 %v385
    %1510 = vmatprep.subr.mxu0 %v390
    %1511 = vmatpush1.msra.mxu0 %v389
    %1512 = vmatprep.subr.mxu0 %v394
    %1513 = vmatpush1.msra.mxu0 %v393
    %1514 = vmatprep.subr.mxu0 %v398
    %1515 = vmatpush1.msra.mxu0 %v397
    %1516 = vmatprep.subr.mxu0 %v402
    %1517 = vmatpush1.msra.mxu0 %v401
    %1518 = vmatprep.subr.mxu0 %v406
    %1519 = vmatpush1.msra.mxu0 %v405
    %1520 = vmatprep.subr.mxu0 %v410
    %1521 = vmatpush1.msra.mxu0 %v409
    %1522 = vmatprep.subr.mxu0 %v414
    %1523 = vmatpush1.msra.mxu0 %v413
    %1524 = vmatprep.subr.mxu0 %v418
    %1525 = vmatpush1.msra.mxu0 %v417
    %1526 = vmatprep.subr.mxu0 %v422
    %1527 = vmatpush1.msra.mxu0 %v421
    %1528 = vmatprep.subr.mxu0 %v426
    %1529 = vmatpush1.msra.mxu0 %v425
    %1530 = vmatprep.subr.mxu0 %v430
    %1531 = vmatpush1.msra.mxu0 %v429
    %1532 = vmatprep.subr.mxu0 0.0
    %1533 = vmatpush1.msra.mxu0 0.0
    %1534 = vmatprep.subr.mxu0 0.0
    %1535 = vmatpush1.msra.mxu0 0.0
    %1536 = vmatprep.subr.mxu0 0.0
    %1537 = vmatpush1.msra.mxu0 0.0
    %1538 = vmatprep.subr.mxu0 0.0
    %1539 = vmatpush1.msra.mxu0 0.0
    %1540 = vmatprep.subr.mxu0 0.0
    %1541 = vmatpush1.msra.mxu0 0.0
    %1542 = vmatprep.subr.mxu0 0.0
    %1543 = vmatpush1.msra.mxu0 0.0
    %1544 = vmatprep.subr.mxu0 0.0
    %1545 = vmatpush1.msra.mxu0 0.0
    %1546 = vmatprep.subr.mxu0 0.0
    %1547 = vmatpush1.msra.mxu0 0.0
    %1548 = vmatprep.subr.mxu0 0.0
    %1549 = vmatpush1.msra.mxu0 0.0
    %1550 = vmatprep.subr.mxu0 0.0
    %1551 = vmatpush1.msra.mxu0 0.0
    %1552 = vmatprep.subr.mxu0 0.0
    %1553 = vmatpush1.msra.mxu0 0.0
    %1554 = vmatprep.subr.mxu0 0.0
    %1555 = vmatpush1.msra.mxu0 0.0
    %1556 = vmatprep.subr.mxu0 0.0
    %1557 = vmatpush1.msra.mxu0 0.0
    %1558 = vmatprep.subr.mxu0 0.0
    %1559 = vmatpush1.msra.mxu0 0.0
    %1560 = vmatprep.subr.mxu0 0.0
    %1561 = vmatpush1.msra.mxu0 0.0
    %1562 = vmatprep.subr.mxu0 0.0
    %1563 = vmatpush1.msra.mxu0 0.0
    %1564 = vmatprep.mubr.f32.mxu0 0.0
    %1565 = vmatmul.mubr.f32.gmra.mrb[0].mxu0 %v1492
    %v1566 = vpop.f32.mrb[0].mxu0
    %v1567 = vadd.f32 0.0, %v1566
    %v1568 = vpop.f32.mrb[0].mxu0
    %v1569 = vadd.f32 0.0, %v1568
    %1570 = vdwg.mxu0
    %1571 = vmatprep.subr.mxu0 %v372
    %1572 = vmatpush1.msra.mxu0 %v371
    %1573 = vmatprep.subr.mxu0 %v376
    %1574 = vmatpush1.msra.mxu0 %v375
    %1575 = vmatprep.subr.mxu0 %v380
    %1576 = vmatpush1.msra.mxu0 %v379
    %1577 = vmatprep.subr.mxu0 %v384
    %1578 = vmatpush1.msra.mxu0 %v383
    %1579 = vmatprep.subr.mxu0 %v388
    %1580 = vmatpush1.msra.mxu0 %v387
    %1581 = vmatprep.subr.mxu0 %v392
    %1582 = vmatpush1.msra.mxu0 %v391
    %1583 = vmatprep.subr.mxu0 %v396
    %1584 = vmatpush1.msra.mxu0 %v395
    %1585 = vmatprep.subr.mxu0 %v400
    %1586 = vmatpush1.msra.mxu0 %v399
    %1587 = vmatprep.subr.mxu0 %v404
    %1588 = vmatpush1.msra.mxu0 %v403
    %1589 = vmatprep.subr.mxu0 %v408
    %1590 = vmatpush1.msra.mxu0 %v407
    %1591 = vmatprep.subr.mxu0 %v412
    %1592 = vmatpush1.msra.mxu0 %v411
    %1593 = vmatprep.subr.mxu0 %v416
    %1594 = vmatpush1.msra.mxu0 %v415
    %1595 = vmatprep.subr.mxu0 %v420
    %1596 = vmatpush1.msra.mxu0 %v419
    %1597 = vmatprep.subr.mxu0 %v424
    %1598 = vmatpush1.msra.mxu0 %v423
    %1599 = vmatprep.subr.mxu0 %v428
    %1600 = vmatpush1.msra.mxu0 %v427
    %1601 = vmatprep.subr.mxu0 %v432
    %1602 = vmatpush1.msra.mxu0 %v431
    %1603 = vmatprep.subr.mxu0 0.0
    %1604 = vmatpush1.msra.mxu0 0.0
    %1605 = vmatprep.subr.mxu0 0.0
    %1606 = vmatpush1.msra.mxu0 0.0
    %1607 = vmatprep.subr.mxu0 0.0
    %1608 = vmatpush1.msra.mxu0 0.0
    %1609 = vmatprep.subr.mxu0 0.0
    %1610 = vmatpush1.msra.mxu0 0.0
    %1611 = vmatprep.subr.mxu0 0.0
    %1612 = vmatpush1.msra.mxu0 0.0
    %1613 = vmatprep.subr.mxu0 0.0
    %1614 = vmatpush1.msra.mxu0 0.0
    %1615 = vmatprep.subr.mxu0 0.0
    %1616 = vmatpush1.msra.mxu0 0.0
    %1617 = vmatprep.subr.mxu0 0.0
    %1618 = vmatpush1.msra.mxu0 0.0
    %1619 = vmatprep.subr.mxu0 0.0
    %1620 = vmatpush1.msra.mxu0 0.0
    %1621 = vmatprep.subr.mxu0 0.0
    %1622 = vmatpush1.msra.mxu0 0.0
    %1623 = vmatprep.subr.mxu0 0.0
    %1624 = vmatpush1.msra.mxu0 0.0
    %1625 = vmatprep.subr.mxu0 0.0
    %1626 = vmatpush1.msra.mxu0 0.0
    %1627 = vmatprep.subr.mxu0 0.0
    %1628 = vmatpush1.msra.mxu0 0.0
    %1629 = vmatprep.subr.mxu0 0.0
    %1630 = vmatpush1.msra.mxu0 0.0
    %1631 = vmatprep.subr.mxu0 0.0
    %1632 = vmatpush1.msra.mxu0 0.0
    %1633 = vmatprep.subr.mxu0 0.0
    %1634 = vmatpush1.msra.mxu0 0.0
    %1635 = vmatprep.mubr.f32.mxu0 0.0
    %1636 = vmatmul.mubr.f32.gmra.mrb[0].mxu0 %v1492
    %v1637 = vpop.f32.mrb[0].mxu0
    %v1638 = vadd.f32 0.0, %v1637
    %v1639 = vpop.f32.mrb[0].mxu0
    %v1640 = vadd.f32 0.0, %v1639
    %1641 = vdwg.mxu0
    %v1642 = vadd.f32 %v1496, %v1567
    %v1643 = vadd.f32 %v1497, %v1569
    %v1644 = vadd.f32 %v1498, %v1638
    %v1645 = vadd.f32 %v1499, %v1640
    %v1646 = vxor.u32 %v1642, 2147483648
    %v1647 = vxor.u32 %v1643, 2147483648
    %v1648 = vxor.u32 %v1644, 2147483648
    %v1649 = vmul.f32 %v1646, 1.442695
    %v1650 = vpow.pop %v1649
    %v1651 = vmul.f32 %v1647, 1.442695
    %v1652 = vpow.pop %v1651
    %v1653 = vmul.f32 %v1648, 1.442695
    %v1654 = vpow.pop %v1653
    %v1655 = vadd.f32 %v1650, 1.0
    %v1656 = vadd.f32 %v1652, 1.0
    %v1657 = vadd.f32 %v1654, 1.0
    %v1658 = vrcp.pop %v1655
    %v1659 = vmul.f32 1.0, %v1658
    %v1660 = vrcp.pop %v1656
    %v1661 = vmul.f32 1.0, %v1660
    %v1662 = vrcp.pop %v1657
    %v1663 = vmul.f32 1.0, %v1662
    %v1664 = vtanh.pop %v1645
    %v1665 = vmul.f32 %v1661, %v1490
    %v1666 = vmul.f32 %v1659, %v1664
    %v1667 = vadd.f32 %v1665, %v1666
    %v1668 = vtanh.pop %v1667
    %v1669 = vmul.f32 %v1663, %v1668
    %s1670 = scalar_lea.vmem [#allocation8], 48
    %1671 = vst [vmem:[%s1670] sm:$0xff] %v1669
    %s1672 = scalar_lea.vmem [#allocation4], 224
    %v1673 = vld [vmem:[%s1672] sm:$0xff]
    %v1674 = vld [vmem:[%s1672 + $0x8] sm:$0xff]
    %v1675 = vld [vmem:[%s1672 + $0x10] sm:$0xff]
    %v1676 = vld [vmem:[%s1672 + $0x18] sm:$0xff]
    %1677 = vmatprep.subr.mxu0 %v370
    %1678 = vmatpush1.msra.mxu0 %v369
    %1679 = vmatprep.subr.mxu0 %v374
    %1680 = vmatpush1.msra.mxu0 %v373
    %1681 = vmatprep.subr.mxu0 %v378
    %1682 = vmatpush1.msra.mxu0 %v377
    %1683 = vmatprep.subr.mxu0 %v382
    %1684 = vmatpush1.msra.mxu0 %v381
    %1685 = vmatprep.subr.mxu0 %v386
    %1686 = vmatpush1.msra.mxu0 %v385
    %1687 = vmatprep.subr.mxu0 %v390
    %1688 = vmatpush1.msra.mxu0 %v389
    %1689 = vmatprep.subr.mxu0 %v394
    %1690 = vmatpush1.msra.mxu0 %v393
    %1691 = vmatprep.subr.mxu0 %v398
    %1692 = vmatpush1.msra.mxu0 %v397
    %1693 = vmatprep.subr.mxu0 %v402
    %1694 = vmatpush1.msra.mxu0 %v401
    %1695 = vmatprep.subr.mxu0 %v406
    %1696 = vmatpush1.msra.mxu0 %v405
    %1697 = vmatprep.subr.mxu0 %v410
    %1698 = vmatpush1.msra.mxu0 %v409
    %1699 = vmatprep.subr.mxu0 %v414
    %1700 = vmatpush1.msra.mxu0 %v413
    %1701 = vmatprep.subr.mxu0 %v418
    %1702 = vmatpush1.msra.mxu0 %v417
    %1703 = vmatprep.subr.mxu0 %v422
    %1704 = vmatpush1.msra.mxu0 %v421
    %1705 = vmatprep.subr.mxu0 %v426
    %1706 = vmatpush1.msra.mxu0 %v425
    %1707 = vmatprep.subr.mxu0 %v430
    %1708 = vmatpush1.msra.mxu0 %v429
    %1709 = vmatprep.subr.mxu0 0.0
    %1710 = vmatpush1.msra.mxu0 0.0
    %1711 = vmatprep.subr.mxu0 0.0
    %1712 = vmatpush1.msra.mxu0 0.0
    %1713 = vmatprep.subr.mxu0 0.0
    %1714 = vmatpush1.msra.mxu0 0.0
    %1715 = vmatprep.subr.mxu0 0.0
    %1716 = vmatpush1.msra.mxu0 0.0
    %1717 = vmatprep.subr.mxu0 0.0
    %1718 = vmatpush1.msra.mxu0 0.0
    %1719 = vmatprep.subr.mxu0 0.0
    %1720 = vmatpush1.msra.mxu0 0.0
    %1721 = vmatprep.subr.mxu0 0.0
    %1722 = vmatpush1.msra.mxu0 0.0
    %1723 = vmatprep.subr.mxu0 0.0
    %1724 = vmatpush1.msra.mxu0 0.0
    %1725 = vmatprep.subr.mxu0 0.0
    %1726 = vmatpush1.msra.mxu0 0.0
    %1727 = vmatprep.subr.mxu0 0.0
    %1728 = vmatpush1.msra.mxu0 0.0
    %1729 = vmatprep.subr.mxu0 0.0
    %1730 = vmatpush1.msra.mxu0 0.0
    %1731 = vmatprep.subr.mxu0 0.0
    %1732 = vmatpush1.msra.mxu0 0.0
    %1733 = vmatprep.subr.mxu0 0.0
    %1734 = vmatpush1.msra.mxu0 0.0
    %1735 = vmatprep.subr.mxu0 0.0
    %1736 = vmatpush1.msra.mxu0 0.0
    %1737 = vmatprep.subr.mxu0 0.0
    %1738 = vmatpush1.msra.mxu0 0.0
    %1739 = vmatprep.subr.mxu0 0.0
    %1740 = vmatpush1.msra.mxu0 0.0
    %1741 = vmatprep.mubr.f32.mxu0 0.0
    %1742 = vmatmul.mubr.f32.gmra.mrb[0].mxu0 %v1669
    %v1743 = vpop.f32.mrb[0].mxu0
    %v1744 = vadd.f32 0.0, %v1743
    %v1745 = vpop.f32.mrb[0].mxu0
    %v1746 = vadd.f32 0.0, %v1745
    %1747 = vdwg.mxu0
    %1748 = vmatprep.subr.mxu0 %v372
    %1749 = vmatpush1.msra.mxu0 %v371
    %1750 = vmatprep.subr.mxu0 %v376
    %1751 = vmatpush1.msra.mxu0 %v375
    %1752 = vmatprep.subr.mxu0 %v380
    %1753 = vmatpush1.msra.mxu0 %v379
    %1754 = vmatprep.subr.mxu0 %v384
    %1755 = vmatpush1.msra.mxu0 %v383
    %1756 = vmatprep.subr.mxu0 %v388
    %1757 = vmatpush1.msra.mxu0 %v387
    %1758 = vmatprep.subr.mxu0 %v392
    %1759 = vmatpush1.msra.mxu0 %v391
    %1760 = vmatprep.subr.mxu0 %v396
    %1761 = vmatpush1.msra.mxu0 %v395
    %1762 = vmatprep.subr.mxu0 %v400
    %1763 = vmatpush1.msra.mxu0 %v399
    %1764 = vmatprep.subr.mxu0 %v404
    %1765 = vmatpush1.msra.mxu0 %v403
    %1766 = vmatprep.subr.mxu0 %v408
    %1767 = vmatpush1.msra.mxu0 %v407
    %1768 = vmatprep.subr.mxu0 %v412
    %1769 = vmatpush1.msra.mxu0 %v411
    %1770 = vmatprep.subr.mxu0 %v416
    %1771 = vmatpush1.msra.mxu0 %v415
    %1772 = vmatprep.subr.mxu0 %v420
    %1773 = vmatpush1.msra.mxu0 %v419
    %1774 = vmatprep.subr.mxu0 %v424
    %1775 = vmatpush1.msra.mxu0 %v423
    %1776 = vmatprep.subr.mxu0 %v428
    %1777 = vmatpush1.msra.mxu0 %v427
    %1778 = vmatprep.subr.mxu0 %v432
    %1779 = vmatpush1.msra.mxu0 %v431
    %1780 = vmatprep.subr.mxu0 0.0
    %1781 = vmatpush1.msra.mxu0 0.0
    %1782 = vmatprep.subr.mxu0 0.0
    %1783 = vmatpush1.msra.mxu0 0.0
    %1784 = vmatprep.subr.mxu0 0.0
    %1785 = vmatpush1.msra.mxu0 0.0
    %1786 = vmatprep.subr.mxu0 0.0
    %1787 = vmatpush1.msra.mxu0 0.0
    %1788 = vmatprep.subr.mxu0 0.0
    %1789 = vmatpush1.msra.mxu0 0.0
    %1790 = vmatprep.subr.mxu0 0.0
    %1791 = vmatpush1.msra.mxu0 0.0
    %1792 = vmatprep.subr.mxu0 0.0
    %1793 = vmatpush1.msra.mxu0 0.0
    %1794 = vmatprep.subr.mxu0 0.0
    %1795 = vmatpush1.msra.mxu0 0.0
    %1796 = vmatprep.subr.mxu0 0.0
    %1797 = vmatpush1.msra.mxu0 0.0
    %1798 = vmatprep.subr.mxu0 0.0
    %1799 = vmatpush1.msra.mxu0 0.0
    %1800 = vmatprep.subr.mxu0 0.0
    %1801 = vmatpush1.msra.mxu0 0.0
    %1802 = vmatprep.subr.mxu0 0.0
    %1803 = vmatpush1.msra.mxu0 0.0
    %1804 = vmatprep.subr.mxu0 0.0
    %1805 = vmatpush1.msra.mxu0 0.0
    %1806 = vmatprep.subr.mxu0 0.0
    %1807 = vmatpush1.msra.mxu0 0.0
    %1808 = vmatprep.subr.mxu0 0.0
    %1809 = vmatpush1.msra.mxu0 0.0
    %1810 = vmatprep.subr.mxu0 0.0
    %1811 = vmatpush1.msra.mxu0 0.0
    %1812 = vmatprep.mubr.f32.mxu0 0.0
    %1813 = vmatmul.mubr.f32.gmra.mrb[0].mxu0 %v1669
    %v1814 = vpop.f32.mrb[0].mxu0
    %v1815 = vadd.f32 0.0, %v1814
    %v1816 = vpop.f32.mrb[0].mxu0
    %v1817 = vadd.f32 0.0, %v1816
    %1818 = vdwg.mxu0
    %v1819 = vadd.f32 %v1673, %v1744
    %v1820 = vadd.f32 %v1674, %v1746
    %v1821 = vadd.f32 %v1675, %v1815
    %v1822 = vadd.f32 %v1676, %v1817
    %v1823 = vxor.u32 %v1819, 2147483648
    %v1824 = vxor.u32 %v1820, 2147483648
    %v1825 = vxor.u32 %v1821, 2147483648
    %v1826 = vmul.f32 %v1823, 1.442695
    %v1827 = vpow.pop %v1826
    %v1828 = vmul.f32 %v1824, 1.442695
    %v1829 = vpow.pop %v1828
    %v1830 = vmul.f32 %v1825, 1.442695
    %v1831 = vpow.pop %v1830
    %v1832 = vadd.f32 %v1827, 1.0
    %v1833 = vadd.f32 %v1829, 1.0
    %v1834 = vadd.f32 %v1831, 1.0
    %v1835 = vrcp.pop %v1832
    %v1836 = vmul.f32 1.0, %v1835
    %v1837 = vrcp.pop %v1833
    %v1838 = vmul.f32 1.0, %v1837
    %v1839 = vrcp.pop %v1834
    %v1840 = vmul.f32 1.0, %v1839
    %v1841 = vtanh.pop %v1822
    %v1842 = vmul.f32 %v1838, %v1667
    %v1843 = vmul.f32 %v1836, %v1841
    %v1844 = vadd.f32 %v1842, %v1843
    %v1845 = vtanh.pop %v1844
    %v1846 = vmul.f32 %v1840, %v1845
    %s1847 = scalar_lea.vmem [#allocation8], 56
    %1848 = vst [vmem:[%s1847] sm:$0xff] %v1846
    %1849 = vst [vmem:[#allocation2] sm:$0xff] %v1846
    %1850 = vst [vmem:[#allocation3] sm:$0xff] %v1844
    // Predicated region
    $region26: #{tpu_custom_call.1} parent=1 // pred_check
      %p1851 = pneg %p35
    $region27: #{tpu_custom_call.1} parent=1 // pred_check_branch
      %1853 = sbr.rel (%p1851) target = $region29
    $region28: #{tpu_custom_call.1} parent=1 // pred_region
      %1854 = vst [vmem:[#allocation9] sm:$0xff] %v1844
    $region29: #{tpu_custom_call.1} parent=1 // pred_fallthru
      _
    // Predicated region
    $region30: #{tpu_custom_call.1} parent=1 // pred_check
      _
    $region31: #{tpu_custom_call.1} parent=1 // pred_check_branch
      %1856 = sbr.rel (0) target = $region33
    $region32: #{tpu_custom_call.1} parent=1 // pred_region
      %s1858 = ssub.s32 1024, 1024
      %1859 = vsyncadd [#allocation7], %s1858
      %s1860 = sshll.u32 [#allocation8], 4
      %s1861 = int_to_ptr.vmem [resolvable:$true] %s1860
      %1866 = dma.vmem_to_hbm [thread:$0]  %s1861, 1024, %s4, [#allocation7], 128, 128, 8
    $region33: #{tpu_custom_call.1} parent=1 // pred_fallthru
      _
    // Predicated region
    $region34: #{tpu_custom_call.1} parent=1 // pred_check
      _
    $region35: #{tpu_custom_call.1} parent=1 // pred_check_branch
      %1868 = sbr.rel (0) target = $region37
    $region36: #{tpu_custom_call.1} parent=1 // pred_region
      %s1870 = ssub.s32 128, 128
      %1871 = vsyncadd [#allocation10], %s1870
      %s1873 = sshll.u32 [#allocation9], 4
      %s1874 = int_to_ptr.vmem [resolvable:$true] %s1873
      %1876 = dma.vmem_to_hbm [thread:$0]  %s1874, 128, %s5, [#allocation10]
    $region37: #{tpu_custom_call.1} parent=1 // pred_fallthru
      _
    // Predicated region
    $region38: #{tpu_custom_call.1} parent=1 // pred_check
      _
    $region39: #{tpu_custom_call.1} parent=1 // pred_check_branch
      %1878 = sbr.rel (0) target = $region41
    $region40: #{tpu_custom_call.1} parent=1 // pred_region
      %1879 = dma.done [#allocation7], 1024
    $region41: #{tpu_custom_call.1} parent=1 // pred_fallthru
      _
    // Predicated region
    $region42: #{tpu_custom_call.1} parent=1 // pred_check
      _
    $region43: #{tpu_custom_call.1} parent=1 // pred_check_branch
      %1881 = sbr.rel (0) target = $region45
    $region44: #{tpu_custom_call.1} parent=1 // pred_region
      %1882 = dma.done [#allocation10], 128
    $region45: #{tpu_custom_call.1} parent=1 // pred_fallthru
      _
    %1883 = vsyncpa [#allocation6], 1
    %1884 = vsyncpa [#allocation7], 1
    %1885 = vsyncpa [#allocation10], 1

</llo_original>
